<compile_context>
chip_gen: v7x
topology: tpu7x:2x2x1
jax: 0.10.0
libtpu: 0.0.40
codegen_flags: <defaults>
</compile_context>

<pallas_src>
import functools

import jax
import jax.numpy as jnp
import numpy as np
from jax.experimental import pallas as pl
from jax.experimental.pallas import tpu as pltpu

LEAKY_SLOPE = 0.2  # nn.LeakyReLU(0.2) in NLayerLeakyMLP


def _leaky(x):
    return jnp.where(x > 0, x, LEAKY_SLOPE * x)


def np_obs_prior_kernel(z_ref, x_ref, w0z_ref, w0x_ref, b0_ref, wht_ref, bh_ref,
                        wft_ref, bf_ref, res_ref, logabs_ref, *,
                        num_hidden, experts_per_block):
    NT = z_ref.shape[0]
    z = z_ref[...]                                   # (NT, L)

    outs = []
    logs = []
    for e in range(experts_per_block):               # static unroll over experts
        x_col = x_ref[:, e:e + 1]                    # (NT, 1)
        w0z = w0z_ref[e]                             # (L, H)   pre-transposed
        w0x = w0x_ref[e]                             # (1, H)   x-coefficient row
        b0 = b0_ref[e]                               # (1, H)

        # Layer 0: primal = z @ W0z + x * w0x + b0 ; tangent seed == w0x.
        pre = (jnp.dot(z, w0z, preferred_element_type=jnp.float32)
               + x_col * w0x + b0)                   # (NT, H)
        pos = pre > 0
        h = jnp.where(pos, pre, LEAKY_SLOPE * pre)
        t = jnp.where(pos, w0x, LEAKY_SLOPE * w0x)   # broadcast (1,H)->(NT,H)

        # Stack primal + tangent along sublanes: one matmul per hidden layer.
        ht = jnp.concatenate([h, t], axis=0)         # (2*NT, H)
        for l in range(num_hidden):
            wl = wht_ref[e, l]                       # (H, H)  pre-transposed
            bl = bh_ref[e, l]                        # (1, H)
            pre_s = jnp.dot(ht, wl, preferred_element_type=jnp.float32)
            prim = pre_s[:NT] + bl
            tang = pre_s[NT:]
            pos = prim > 0
            h = jnp.where(pos, prim, LEAKY_SLOPE * prim)
            t = jnp.where(pos, tang, LEAKY_SLOPE * tang)
            ht = jnp.concatenate([h, t], axis=0)

        # Final Linear(H -> 1) on the stacked operand.
        wf = wft_ref[e]                              # (H, 1)
        of = jnp.dot(ht, wf, preferred_element_type=jnp.float32)   # (2*NT, 1)
        out_e = of[:NT] + bf_ref[e]                  # (NT, 1)
        tout_e = of[NT:]                             # (NT, 1) = d residual / d x_i
        outs.append(out_e)
        logs.append(jnp.log(jnp.abs(tout_e)))

    res_ref[...] = jnp.concatenate(outs, axis=1)         # (NT, E) lane-dense
    logabs_ref[...] = jnp.concatenate(logs, axis=1)      # (NT, E)


def np_obs_prior_forward(z, xs, packed_params, masks=None, *, batch_tile=256):
    """Returns (residuals[(batch, -1, input_dim)], sum_log_abs_det_jacobian[scalar])."""
    w0z, w0x, b0, wht, bh, wft, bf = packed_params
    batch_size, L = z.shape
    D = xs.shape[-1]
    H = w0z.shape[-1]
    num_hidden = wht.shape[1]

    yy = z.reshape(-1, L).astype(jnp.float32)             # (N, L)
    xx = xs.reshape(-1, D).astype(jnp.float32)            # (N, D)
    N = yy.shape[0]

    # Fold masks into the layer-0 weights (zero kernel cost; does not affect
    # the d/dx_i tangent, matching the reference semantics).
    if masks is not None:
        m = jnp.asarray(masks, jnp.float32).reshape(D, L)
        w0z = w0z * m[:, :, None]

    # Expert blocking: E experts per grid step, lane-dense (NT, E) outputs.
    if D <= 128:
        E = D
    else:
        assert D % 128 == 0, "TODO(synk): pad input_dim to a multiple of 128"
        E = 128
    GE = D // E

    # Batch tiling (pad N up to a multiple of the tile; padded rows are sliced
    # off before the reduction, so they cannot poison the log-det sum).
    NT = min(int(batch_tile), N)
    NT = ((NT + 7) // 8) * 8
    N_pad = ((N + NT - 1) // NT) * NT
    GN = N_pad // NT
    if N_pad != N:
        yy = jnp.pad(yy, ((0, N_pad - N), (0, 0)))
        xx = jnp.pad(xx, ((0, N_pad - N), (0, 0)))

    kernel = functools.partial(np_obs_prior_kernel,
                               num_hidden=num_hidden, experts_per_block=E)

    res, logabs = pl.pallas_call(
        kernel,
        out_shape=(
            jax.ShapeDtypeStruct((N_pad, D), jnp.float32),   # residuals
            jax.ShapeDtypeStruct((N_pad, D), jnp.float32),   # log|d res/d x_i|
        ),
        grid=(GE, GN),  # gn is the inner axis -> expert weights stay resident
        in_specs=[
            pl.BlockSpec((NT, L), lambda ge, gn: (gn, 0)),                 # z
            pl.BlockSpec((NT, E), lambda ge, gn: (gn, ge)),                # xs cols
            pl.BlockSpec((E, L, H), lambda ge, gn: (ge, 0, 0)),            # W0z^T
            pl.BlockSpec((E, 1, H), lambda ge, gn: (ge, 0, 0)),            # w0x
            pl.BlockSpec((E, 1, H), lambda ge, gn: (ge, 0, 0)),            # b0
            pl.BlockSpec((E, num_hidden, H, H), lambda ge, gn: (ge, 0, 0, 0)),  # Wl^T
            pl.BlockSpec((E, num_hidden, 1, H), lambda ge, gn: (ge, 0, 0, 0)),  # bl
            pl.BlockSpec((E, H, 1), lambda ge, gn: (ge, 0, 0)),            # Wf^T
            pl.BlockSpec((E, 1, 1), lambda ge, gn: (ge, 0, 0)),            # bf
        ],
        out_specs=(
            pl.BlockSpec((NT, E), lambda ge, gn: (gn, ge)),
            pl.BlockSpec((NT, E), lambda ge, gn: (gn, ge)),
        ),
        compiler_params=pltpu.CompilerParams(
            dimension_semantics=("parallel", "parallel"),
            vmem_limit_bytes=32 * 1024 * 1024,
        ),
    )(yy, xx, w0z, w0x, b0, wht, bh, wft, bf)

    res = res[:N]
    logabs = logabs[:N]
    residuals = res.reshape(batch_size, -1, D)
    return residuals, jnp.sum(logabs)


def init_params(key, latent_size, input_dim, num_layers, hidden_dim):
    """Deterministic synthetic weights for the input_dim MLPs (stacked)."""
    L, D, H = latent_size, input_dim, hidden_dim
    Lp1 = L + 1
    nh = num_layers - 1
    keys = jax.random.split(key, 6)
    scale = 0.3
    W0 = jax.random.normal(keys[0], (D, H, Lp1), jnp.float32) * scale
    b0 = jax.random.normal(keys[1], (D, H), jnp.float32) * scale
    Wh = jax.random.normal(keys[2], (D, nh, H, H), jnp.float32) * scale
    bh = jax.random.normal(keys[3], (D, nh, H), jnp.float32) * scale
    Wf = jax.random.normal(keys[4], (D, 1, H), jnp.float32) * scale
    bf = jax.random.normal(keys[5], (D, 1), jnp.float32) * scale

    raw = (W0, b0, Wh, bh, Wf, bf)
    W0t = jnp.transpose(W0, (0, 2, 1))       # (D, Lp1, H)
    packed = (
        W0t[:, :L, :],                       # (D, L, H)  z-part of layer 0
        W0t[:, L:, :],                       # (D, 1, H)  x-coefficient (== tangent seed)
        b0[:, None, :],                      # (D, 1, H)
        jnp.transpose(Wh, (0, 1, 3, 2)),     # (D, nh, H, H)
        bh[:, :, None, :],                   # (D, nh, 1, H)
        jnp.transpose(Wf, (0, 2, 1)),        # (D, H, 1)
        bf[:, :, None],                      # (D, 1, 1)
    )
    return raw, packed


# ---------------- pure-JAX reference (mirrors the PyTorch forward) -----------
def _mlp_apply(raw, i, x):   # x: (L+1,) -> (1,)
    W0, b0, Wh, bh, Wf, bf = raw
    h = W0[i] @ x + b0[i]
    h = _leaky(h)
    for l in range(Wh.shape[1]):
        h = Wh[i, l] @ h + bh[i, l]
        h = _leaky(h)
    return Wf[i] @ h + bf[i]


def ref_forward(z, xs, raw, masks=None):
    batch, L = z.shape
    D = xs.shape[-1]
    yy = z.reshape(-1, L)
    xx = xs.reshape(-1, 1, D)
    residuals = []
    total = jnp.float32(0.0)
    for i in range(D):
        if masks is None:
            inp = jnp.concatenate([yy, xx[:, :, i]], axis=-1)
        else:
            inp = jnp.concatenate([yy * masks[i], xx[:, :, i]], axis=-1)
        f = lambda x, i=i: _mlp_apply(raw, i, x)
        res = jax.vmap(f)(inp)                          # (N, 1)
        jac = jax.vmap(jax.jacfwd(f))(inp)              # (N, 1, L+1)
        total = total + jnp.sum(jnp.log(jnp.abs(jac[:, 0, -1])))
        residuals.append(res)
    residuals = jnp.concatenate(residuals, axis=-1).reshape(batch, -1, D)
    return residuals, total


if __name__ == "__main__":
    latent_size, input_dim, num_layers, hidden_dim = 8, 4, 3, 32
    batch = 20   # not a multiple of 8 -> exercises padding + multi-tile grid

    key = jax.random.PRNGKey(0)
    kz, kx, kp, km = jax.random.split(key, 4)
    z = jax.random.normal(kz, (batch, latent_size), jnp.float32)
    xs = jax.random.normal(kx, (batch, input_dim), jnp.float32)
    raw, packed = init_params(kp, latent_size, input_dim, num_layers, hidden_dim)

    # Case 1: no masks, small batch tile -> grid with 3 batch tiles + padding.
    residuals, slogdet = np_obs_prior_forward(z, xs, packed, batch_tile=8)
    jax.block_until_ready((residuals, slogdet))
    res_ref, s_ref = ref_forward(z, xs, raw)
    np.testing.assert_allclose(np.asarray(residuals), np.asarray(res_ref),
                               rtol=1e-4, atol=1e-4)
    np.testing.assert_allclose(float(slogdet), float(s_ref), rtol=2e-4, atol=1e-3)

    # Case 2: with masks (folded into layer-0 weights), default batch tile.
    masks = (jax.random.uniform(km, (input_dim, latent_size)) > 0.5).astype(jnp.float32)
    residuals_m, slogdet_m = np_obs_prior_forward(z, xs, packed, masks=masks)
    jax.block_until_ready((residuals_m, slogdet_m))
    res_ref_m, s_ref_m = ref_forward(z, xs, raw, masks=masks)
    np.testing.assert_allclose(np.asarray(residuals_m), np.asarray(res_ref_m),
                               rtol=1e-4, atol=1e-4)
    np.testing.assert_allclose(float(slogdet_m), float(s_ref_m), rtol=2e-4, atol=1e-3)

    print("KERNEL_OK")
</pallas_src>

<mosaic_0001>
module attributes {stable_mosaic.version = 11 : i64} {
  func.func @np_obs_prior_kernel(%arg0: i32, %arg1: i32, %arg2: memref<8x8xf32, #tpu.memory_space<vmem>>, %arg3: memref<8x4xf32, #tpu.memory_space<vmem>>, %arg4: memref<4x8x32xf32, #tpu.memory_space<vmem>>, %arg5: memref<4x1x32xf32, #tpu.memory_space<vmem>>, %arg6: memref<4x1x32xf32, #tpu.memory_space<vmem>>, %arg7: memref<4x2x32x32xf32, #tpu.memory_space<vmem>>, %arg8: memref<4x2x1x32xf32, #tpu.memory_space<vmem>>, %arg9: memref<4x32x1xf32, #tpu.memory_space<vmem>>, %arg10: memref<4x1x1xf32, #tpu.memory_space<vmem>>, %arg11: memref<8x4xf32, #tpu.memory_space<vmem>>, %arg12: memref<8x4xf32, #tpu.memory_space<vmem>>) attributes {dimension_semantics = [#tpu.dimension_semantics<parallel>, #tpu.dimension_semantics<parallel>], iteration_bounds = array<i64: 1, 3>, scalar_prefetch = 0 : i64, scratch_operands = 0 : i64, tpu.core_type = #tpu.core_type<tc>, window_params = [{transform_indices = @transform_0, window_bounds = array<i64: 8, 8>}, {transform_indices = @transform_1, window_bounds = array<i64: 8, 4>}, {transform_indices = @transform_2, window_bounds = array<i64: 4, 8, 32>}, {transform_indices = @transform_3, window_bounds = array<i64: 4, 1, 32>}, {transform_indices = @transform_4, window_bounds = array<i64: 4, 1, 32>}, {transform_indices = @transform_5, window_bounds = array<i64: 4, 2, 32, 32>}, {transform_indices = @transform_6, window_bounds = array<i64: 4, 2, 1, 32>}, {transform_indices = @transform_7, window_bounds = array<i64: 4, 32, 1>}, {transform_indices = @transform_8, window_bounds = array<i64: 4, 1, 1>}, {transform_indices = @transform_9, window_bounds = array<i64: 8, 4>}, {transform_indices = @transform_10, window_bounds = array<i64: 8, 4>}]} {
    %c0 = arith.constant 0 : index
    %c0_0 = arith.constant 0 : index
    %0 = vector.load %arg2[%c0, %c0_0] : memref<8x8xf32, #tpu.memory_space<vmem>>, vector<8x8xf32>
    %c0_1 = arith.constant 0 : index
    %c0_2 = arith.constant 0 : index
    %1 = vector.load %arg3[%c0_1, %c0_2] : memref<8x4xf32, #tpu.memory_space<vmem>>, vector<8x1xf32>
    %c0_3 = arith.constant 0 : index
    %c0_4 = arith.constant 0 : index
    %c0_5 = arith.constant 0 : index
    %2 = vector.load %arg4[%c0_3, %c0_4, %c0_5] : memref<4x8x32xf32, #tpu.memory_space<vmem>>, vector<1x8x32xf32>
    %3 = vector.shape_cast %2 : vector<1x8x32xf32> to vector<8x32xf32>
    %c0_6 = arith.constant 0 : index
    %c0_7 = arith.constant 0 : index
    %c0_8 = arith.constant 0 : index
    %4 = vector.load %arg5[%c0_6, %c0_7, %c0_8] : memref<4x1x32xf32, #tpu.memory_space<vmem>>, vector<1x1x32xf32>
    %5 = vector.shape_cast %4 : vector<1x1x32xf32> to vector<1x32xf32>
    %c0_9 = arith.constant 0 : index
    %c0_10 = arith.constant 0 : index
    %c0_11 = arith.constant 0 : index
    %6 = vector.load %arg6[%c0_9, %c0_10, %c0_11] : memref<4x1x32xf32, #tpu.memory_space<vmem>>, vector<1x1x32xf32>
    %7 = vector.shape_cast %6 : vector<1x1x32xf32> to vector<1x32xf32>
    %cst = arith.constant dense<0.000000e+00> : vector<8x32xf32>
    %8 = tpu.matmul %0, %3, %cst {dimension_numbers = #tpu.dot_dimension_numbers<[1], [0], [0], [1], [0, 0, 1, 1], [], []>} : vector<8x8xf32>, vector<8x32xf32>, vector<8x32xf32> -> vector<8x32xf32>
    %9 = vector.broadcast %1 : vector<8x1xf32> to vector<8x32xf32>
    %10 = vector.broadcast %5 : vector<1x32xf32> to vector<8x32xf32>
    %11 = arith.mulf %9, %10 : vector<8x32xf32>
    %12 = arith.addf %8, %11 : vector<8x32xf32>
    %13 = vector.broadcast %7 : vector<1x32xf32> to vector<8x32xf32>
    %14 = arith.addf %12, %13 : vector<8x32xf32>
    %cst_12 = arith.constant 0.000000e+00 : f32
    %15 = vector.broadcast %cst_12 : f32 to vector<8x32xf32>
    %16 = arith.cmpf ogt, %14, %15 : vector<8x32xf32>
    %cst_13 = arith.constant 2.000000e-01 : f32
    %17 = vector.broadcast %cst_13 : f32 to vector<8x32xf32>
    %18 = arith.mulf %17, %14 : vector<8x32xf32>
    %19 = arith.select %16, %14, %18 : vector<8x32xi1>, vector<8x32xf32>
    %cst_14 = arith.constant 2.000000e-01 : f32
    %20 = vector.broadcast %cst_14 : f32 to vector<1x32xf32>
    %21 = arith.mulf %20, %5 : vector<1x32xf32>
    %22 = vector.shape_cast %5 : vector<1x32xf32> to vector<1x32xf32>
    %23 = vector.broadcast %22 : vector<1x32xf32> to vector<8x32xf32>
    %24 = vector.shape_cast %21 : vector<1x32xf32> to vector<1x32xf32>
    %25 = vector.broadcast %24 : vector<1x32xf32> to vector<8x32xf32>
    %26 = arith.select %16, %23, %25 : vector<8x32xi1>, vector<8x32xf32>
    %27 = tpu.concatenate %19, %26 in 0 : vector<8x32xf32>, vector<8x32xf32> -> vector<16x32xf32>
    %c0_15 = arith.constant 0 : index
    %c0_16 = arith.constant 0 : index
    %c0_17 = arith.constant 0 : index
    %c0_18 = arith.constant 0 : index
    %28 = vector.load %arg7[%c0_15, %c0_16, %c0_17, %c0_18] : memref<4x2x32x32xf32, #tpu.memory_space<vmem>>, vector<1x1x32x32xf32>
    %29 = vector.shape_cast %28 : vector<1x1x32x32xf32> to vector<32x32xf32>
    %c0_19 = arith.constant 0 : index
    %c0_20 = arith.constant 0 : index
    %c0_21 = arith.constant 0 : index
    %c0_22 = arith.constant 0 : index
    %30 = vector.load %arg8[%c0_19, %c0_20, %c0_21, %c0_22] : memref<4x2x1x32xf32, #tpu.memory_space<vmem>>, vector<1x1x1x32xf32>
    %31 = vector.shape_cast %30 : vector<1x1x1x32xf32> to vector<1x32xf32>
    %cst_23 = arith.constant dense<0.000000e+00> : vector<16x32xf32>
    %32 = tpu.matmul %27, %29, %cst_23 {dimension_numbers = #tpu.dot_dimension_numbers<[1], [0], [0], [1], [0, 0, 1, 1], [], []>} : vector<16x32xf32>, vector<32x32xf32>, vector<16x32xf32> -> vector<16x32xf32>
    %33 = vector.extract_strided_slice %32 {offsets = [0, 0], sizes = [8, 32], strides = [1, 1]} : vector<16x32xf32> to vector<8x32xf32>
    %34 = vector.broadcast %31 : vector<1x32xf32> to vector<8x32xf32>
    %35 = arith.addf %33, %34 : vector<8x32xf32>
    %36 = vector.extract_strided_slice %32 {offsets = [8, 0], sizes = [8, 32], strides = [1, 1]} : vector<16x32xf32> to vector<8x32xf32>
    %cst_24 = arith.constant 0.000000e+00 : f32
    %37 = vector.broadcast %cst_24 : f32 to vector<8x32xf32>
    %38 = arith.cmpf ogt, %35, %37 : vector<8x32xf32>
    %cst_25 = arith.constant 2.000000e-01 : f32
    %39 = vector.broadcast %cst_25 : f32 to vector<8x32xf32>
    %40 = arith.mulf %39, %35 : vector<8x32xf32>
    %41 = arith.select %38, %35, %40 : vector<8x32xi1>, vector<8x32xf32>
    %cst_26 = arith.constant 2.000000e-01 : f32
    %42 = vector.broadcast %cst_26 : f32 to vector<8x32xf32>
    %43 = arith.mulf %42, %36 : vector<8x32xf32>
    %44 = arith.select %38, %36, %43 : vector<8x32xi1>, vector<8x32xf32>
    %45 = tpu.concatenate %41, %44 in 0 : vector<8x32xf32>, vector<8x32xf32> -> vector<16x32xf32>
    %c0_27 = arith.constant 0 : index
    %c1 = arith.constant 1 : index
    %c0_28 = arith.constant 0 : index
    %c0_29 = arith.constant 0 : index
    %46 = vector.load %arg7[%c0_27, %c1, %c0_28, %c0_29] : memref<4x2x32x32xf32, #tpu.memory_space<vmem>>, vector<1x1x32x32xf32>
    %47 = vector.shape_cast %46 : vector<1x1x32x32xf32> to vector<32x32xf32>
    %c0_30 = arith.constant 0 : index
    %c1_31 = arith.constant 1 : index
    %c0_32 = arith.constant 0 : index
    %c0_33 = arith.constant 0 : index
    %48 = vector.load %arg8[%c0_30, %c1_31, %c0_32, %c0_33] : memref<4x2x1x32xf32, #tpu.memory_space<vmem>>, vector<1x1x1x32xf32>
    %49 = vector.shape_cast %48 : vector<1x1x1x32xf32> to vector<1x32xf32>
    %cst_34 = arith.constant dense<0.000000e+00> : vector<16x32xf32>
    %50 = tpu.matmul %45, %47, %cst_34 {dimension_numbers = #tpu.dot_dimension_numbers<[1], [0], [0], [1], [0, 0, 1, 1], [], []>} : vector<16x32xf32>, vector<32x32xf32>, vector<16x32xf32> -> vector<16x32xf32>
    %51 = vector.extract_strided_slice %50 {offsets = [0, 0], sizes = [8, 32], strides = [1, 1]} : vector<16x32xf32> to vector<8x32xf32>
    %52 = vector.broadcast %49 : vector<1x32xf32> to vector<8x32xf32>
    %53 = arith.addf %51, %52 : vector<8x32xf32>
    %54 = vector.extract_strided_slice %50 {offsets = [8, 0], sizes = [8, 32], strides = [1, 1]} : vector<16x32xf32> to vector<8x32xf32>
    %cst_35 = arith.constant 0.000000e+00 : f32
    %55 = vector.broadcast %cst_35 : f32 to vector<8x32xf32>
    %56 = arith.cmpf ogt, %53, %55 : vector<8x32xf32>
    %cst_36 = arith.constant 2.000000e-01 : f32
    %57 = vector.broadcast %cst_36 : f32 to vector<8x32xf32>
    %58 = arith.mulf %57, %53 : vector<8x32xf32>
    %59 = arith.select %56, %53, %58 : vector<8x32xi1>, vector<8x32xf32>
    %cst_37 = arith.constant 2.000000e-01 : f32
    %60 = vector.broadcast %cst_37 : f32 to vector<8x32xf32>
    %61 = arith.mulf %60, %54 : vector<8x32xf32>
    %62 = arith.select %56, %54, %61 : vector<8x32xi1>, vector<8x32xf32>
    %63 = tpu.concatenate %59, %62 in 0 : vector<8x32xf32>, vector<8x32xf32> -> vector<16x32xf32>
    %c0_38 = arith.constant 0 : index
    %c0_39 = arith.constant 0 : index
    %c0_40 = arith.constant 0 : index
    %64 = vector.load %arg9[%c0_38, %c0_39, %c0_40] : memref<4x32x1xf32, #tpu.memory_space<vmem>>, vector<1x32x1xf32>
    %65 = vector.shape_cast %64 : vector<1x32x1xf32> to vector<32x1xf32>
    %cst_41 = arith.constant dense<0.000000e+00> : vector<16x1xf32>
    %66 = tpu.matmul %63, %65, %cst_41 {dimension_numbers = #tpu.dot_dimension_numbers<[1], [0], [0], [1], [0, 0, 1, 1], [], []>} : vector<16x32xf32>, vector<32x1xf32>, vector<16x1xf32> -> vector<16x1xf32>
    %67 = vector.extract_strided_slice %66 {offsets = [0, 0], sizes = [8, 1], strides = [1, 1]} : vector<16x1xf32> to vector<8x1xf32>
    %c0_42 = arith.constant 0 : index
    %c0_43 = arith.constant 0 : index
    %c0_44 = arith.constant 0 : index
    %68 = vector.load %arg10[%c0_42, %c0_43, %c0_44] : memref<4x1x1xf32, #tpu.memory_space<vmem>>, vector<1x1x1xf32>
    %69 = vector.shape_cast %68 : vector<1x1x1xf32> to vector<1x1xf32>
    %70 = vector.broadcast %69 : vector<1x1xf32> to vector<8x1xf32>
    %71 = arith.addf %67, %70 : vector<8x1xf32>
    %72 = vector.extract_strided_slice %66 {offsets = [8, 0], sizes = [8, 1], strides = [1, 1]} : vector<16x1xf32> to vector<8x1xf32>
    %73 = math.absf %72 : vector<8x1xf32>
    %74 = math.log %73 : vector<8x1xf32>
    %c0_45 = arith.constant 0 : index
    %c1_46 = arith.constant 1 : index
    %75 = vector.load %arg3[%c0_45, %c1_46] : memref<8x4xf32, #tpu.memory_space<vmem>>, vector<8x1xf32>
    %c1_47 = arith.constant 1 : index
    %c0_48 = arith.constant 0 : index
    %c0_49 = arith.constant 0 : index
    %76 = vector.load %arg4[%c1_47, %c0_48, %c0_49] : memref<4x8x32xf32, #tpu.memory_space<vmem>>, vector<1x8x32xf32>
    %77 = vector.shape_cast %76 : vector<1x8x32xf32> to vector<8x32xf32>
    %c1_50 = arith.constant 1 : index
    %c0_51 = arith.constant 0 : index
    %c0_52 = arith.constant 0 : index
    %78 = vector.load %arg5[%c1_50, %c0_51, %c0_52] : memref<4x1x32xf32, #tpu.memory_space<vmem>>, vector<1x1x32xf32>
    %79 = vector.shape_cast %78 : vector<1x1x32xf32> to vector<1x32xf32>
    %c1_53 = arith.constant 1 : index
    %c0_54 = arith.constant 0 : index
    %c0_55 = arith.constant 0 : index
    %80 = vector.load %arg6[%c1_53, %c0_54, %c0_55] : memref<4x1x32xf32, #tpu.memory_space<vmem>>, vector<1x1x32xf32>
    %81 = vector.shape_cast %80 : vector<1x1x32xf32> to vector<1x32xf32>
    %cst_56 = arith.constant dense<0.000000e+00> : vector<8x32xf32>
    %82 = tpu.matmul %0, %77, %cst_56 {dimension_numbers = #tpu.dot_dimension_numbers<[1], [0], [0], [1], [0, 0, 1, 1], [], []>} : vector<8x8xf32>, vector<8x32xf32>, vector<8x32xf32> -> vector<8x32xf32>
    %83 = vector.broadcast %75 : vector<8x1xf32> to vector<8x32xf32>
    %84 = vector.broadcast %79 : vector<1x32xf32> to vector<8x32xf32>
    %85 = arith.mulf %83, %84 : vector<8x32xf32>
    %86 = arith.addf %82, %85 : vector<8x32xf32>
    %87 = vector.broadcast %81 : vector<1x32xf32> to vector<8x32xf32>
    %88 = arith.addf %86, %87 : vector<8x32xf32>
    %cst_57 = arith.constant 0.000000e+00 : f32
    %89 = vector.broadcast %cst_57 : f32 to vector<8x32xf32>
    %90 = arith.cmpf ogt, %88, %89 : vector<8x32xf32>
    %cst_58 = arith.constant 2.000000e-01 : f32
    %91 = vector.broadcast %cst_58 : f32 to vector<8x32xf32>
    %92 = arith.mulf %91, %88 : vector<8x32xf32>
    %93 = arith.select %90, %88, %92 : vector<8x32xi1>, vector<8x32xf32>
    %cst_59 = arith.constant 2.000000e-01 : f32
    %94 = vector.broadcast %cst_59 : f32 to vector<1x32xf32>
    %95 = arith.mulf %94, %79 : vector<1x32xf32>
    %96 = vector.shape_cast %79 : vector<1x32xf32> to vector<1x32xf32>
    %97 = vector.broadcast %96 : vector<1x32xf32> to vector<8x32xf32>
    %98 = vector.shape_cast %95 : vector<1x32xf32> to vector<1x32xf32>
    %99 = vector.broadcast %98 : vector<1x32xf32> to vector<8x32xf32>
    %100 = arith.select %90, %97, %99 : vector<8x32xi1>, vector<8x32xf32>
    %101 = tpu.concatenate %93, %100 in 0 : vector<8x32xf32>, vector<8x32xf32> -> vector<16x32xf32>
    %c1_60 = arith.constant 1 : index
    %c0_61 = arith.constant 0 : index
    %c0_62 = arith.constant 0 : index
    %c0_63 = arith.constant 0 : index
    %102 = vector.load %arg7[%c1_60, %c0_61, %c0_62, %c0_63] : memref<4x2x32x32xf32, #tpu.memory_space<vmem>>, vector<1x1x32x32xf32>
    %103 = vector.shape_cast %102 : vector<1x1x32x32xf32> to vector<32x32xf32>
    %c1_64 = arith.constant 1 : index
    %c0_65 = arith.constant 0 : index
    %c0_66 = arith.constant 0 : index
    %c0_67 = arith.constant 0 : index
    %104 = vector.load %arg8[%c1_64, %c0_65, %c0_66, %c0_67] : memref<4x2x1x32xf32, #tpu.memory_space<vmem>>, vector<1x1x1x32xf32>
    %105 = vector.shape_cast %104 : vector<1x1x1x32xf32> to vector<1x32xf32>
    %cst_68 = arith.constant dense<0.000000e+00> : vector<16x32xf32>
    %106 = tpu.matmul %101, %103, %cst_68 {dimension_numbers = #tpu.dot_dimension_numbers<[1], [0], [0], [1], [0, 0, 1, 1], [], []>} : vector<16x32xf32>, vector<32x32xf32>, vector<16x32xf32> -> vector<16x32xf32>
    %107 = vector.extract_strided_slice %106 {offsets = [0, 0], sizes = [8, 32], strides = [1, 1]} : vector<16x32xf32> to vector<8x32xf32>
    %108 = vector.broadcast %105 : vector<1x32xf32> to vector<8x32xf32>
    %109 = arith.addf %107, %108 : vector<8x32xf32>
    %110 = vector.extract_strided_slice %106 {offsets = [8, 0], sizes = [8, 32], strides = [1, 1]} : vector<16x32xf32> to vector<8x32xf32>
    %cst_69 = arith.constant 0.000000e+00 : f32
    %111 = vector.broadcast %cst_69 : f32 to vector<8x32xf32>
    %112 = arith.cmpf ogt, %109, %111 : vector<8x32xf32>
    %cst_70 = arith.constant 2.000000e-01 : f32
    %113 = vector.broadcast %cst_70 : f32 to vector<8x32xf32>
    %114 = arith.mulf %113, %109 : vector<8x32xf32>
    %115 = arith.select %112, %109, %114 : vector<8x32xi1>, vector<8x32xf32>
    %cst_71 = arith.constant 2.000000e-01 : f32
    %116 = vector.broadcast %cst_71 : f32 to vector<8x32xf32>
    %117 = arith.mulf %116, %110 : vector<8x32xf32>
    %118 = arith.select %112, %110, %117 : vector<8x32xi1>, vector<8x32xf32>
    %119 = tpu.concatenate %115, %118 in 0 : vector<8x32xf32>, vector<8x32xf32> -> vector<16x32xf32>
    %c1_72 = arith.constant 1 : index
    %c1_73 = arith.constant 1 : index
    %c0_74 = arith.constant 0 : index
    %c0_75 = arith.constant 0 : index
    %120 = vector.load %arg7[%c1_72, %c1_73, %c0_74, %c0_75] : memref<4x2x32x32xf32, #tpu.memory_space<vmem>>, vector<1x1x32x32xf32>
    %121 = vector.shape_cast %120 : vector<1x1x32x32xf32> to vector<32x32xf32>
    %c1_76 = arith.constant 1 : index
    %c1_77 = arith.constant 1 : index
    %c0_78 = arith.constant 0 : index
    %c0_79 = arith.constant 0 : index
    %122 = vector.load %arg8[%c1_76, %c1_77, %c0_78, %c0_79] : memref<4x2x1x32xf32, #tpu.memory_space<vmem>>, vector<1x1x1x32xf32>
    %123 = vector.shape_cast %122 : vector<1x1x1x32xf32> to vector<1x32xf32>
    %cst_80 = arith.constant dense<0.000000e+00> : vector<16x32xf32>
    %124 = tpu.matmul %119, %121, %cst_80 {dimension_numbers = #tpu.dot_dimension_numbers<[1], [0], [0], [1], [0, 0, 1, 1], [], []>} : vector<16x32xf32>, vector<32x32xf32>, vector<16x32xf32> -> vector<16x32xf32>
    %125 = vector.extract_strided_slice %124 {offsets = [0, 0], sizes = [8, 32], strides = [1, 1]} : vector<16x32xf32> to vector<8x32xf32>
    %126 = vector.broadcast %123 : vector<1x32xf32> to vector<8x32xf32>
    %127 = arith.addf %125, %126 : vector<8x32xf32>
    %128 = vector.extract_strided_slice %124 {offsets = [8, 0], sizes = [8, 32], strides = [1, 1]} : vector<16x32xf32> to vector<8x32xf32>
    %cst_81 = arith.constant 0.000000e+00 : f32
    %129 = vector.broadcast %cst_81 : f32 to vector<8x32xf32>
    %130 = arith.cmpf ogt, %127, %129 : vector<8x32xf32>
    %cst_82 = arith.constant 2.000000e-01 : f32
    %131 = vector.broadcast %cst_82 : f32 to vector<8x32xf32>
    %132 = arith.mulf %131, %127 : vector<8x32xf32>
    %133 = arith.select %130, %127, %132 : vector<8x32xi1>, vector<8x32xf32>
    %cst_83 = arith.constant 2.000000e-01 : f32
    %134 = vector.broadcast %cst_83 : f32 to vector<8x32xf32>
    %135 = arith.mulf %134, %128 : vector<8x32xf32>
    %136 = arith.select %130, %128, %135 : vector<8x32xi1>, vector<8x32xf32>
    %137 = tpu.concatenate %133, %136 in 0 : vector<8x32xf32>, vector<8x32xf32> -> vector<16x32xf32>
    %c1_84 = arith.constant 1 : index
    %c0_85 = arith.constant 0 : index
    %c0_86 = arith.constant 0 : index
    %138 = vector.load %arg9[%c1_84, %c0_85, %c0_86] : memref<4x32x1xf32, #tpu.memory_space<vmem>>, vector<1x32x1xf32>
    %139 = vector.shape_cast %138 : vector<1x32x1xf32> to vector<32x1xf32>
    %cst_87 = arith.constant dense<0.000000e+00> : vector<16x1xf32>
    %140 = tpu.matmul %137, %139, %cst_87 {dimension_numbers = #tpu.dot_dimension_numbers<[1], [0], [0], [1], [0, 0, 1, 1], [], []>} : vector<16x32xf32>, vector<32x1xf32>, vector<16x1xf32> -> vector<16x1xf32>
    %141 = vector.extract_strided_slice %140 {offsets = [0, 0], sizes = [8, 1], strides = [1, 1]} : vector<16x1xf32> to vector<8x1xf32>
    %c1_88 = arith.constant 1 : index
    %c0_89 = arith.constant 0 : index
    %c0_90 = arith.constant 0 : index
    %142 = vector.load %arg10[%c1_88, %c0_89, %c0_90] : memref<4x1x1xf32, #tpu.memory_space<vmem>>, vector<1x1x1xf32>
    %143 = vector.shape_cast %142 : vector<1x1x1xf32> to vector<1x1xf32>
    %144 = vector.broadcast %143 : vector<1x1xf32> to vector<8x1xf32>
    %145 = arith.addf %141, %144 : vector<8x1xf32>
    %146 = vector.extract_strided_slice %140 {offsets = [8, 0], sizes = [8, 1], strides = [1, 1]} : vector<16x1xf32> to vector<8x1xf32>
    %147 = math.absf %146 : vector<8x1xf32>
    %148 = math.log %147 : vector<8x1xf32>
    %c0_91 = arith.constant 0 : index
    %c2 = arith.constant 2 : index
    %149 = vector.load %arg3[%c0_91, %c2] : memref<8x4xf32, #tpu.memory_space<vmem>>, vector<8x1xf32>
    %c2_92 = arith.constant 2 : index
    %c0_93 = arith.constant 0 : index
    %c0_94 = arith.constant 0 : index
    %150 = vector.load %arg4[%c2_92, %c0_93, %c0_94] : memref<4x8x32xf32, #tpu.memory_space<vmem>>, vector<1x8x32xf32>
    %151 = vector.shape_cast %150 : vector<1x8x32xf32> to vector<8x32xf32>
    %c2_95 = arith.constant 2 : index
    %c0_96 = arith.constant 0 : index
    %c0_97 = arith.constant 0 : index
    %152 = vector.load %arg5[%c2_95, %c0_96, %c0_97] : memref<4x1x32xf32, #tpu.memory_space<vmem>>, vector<1x1x32xf32>
    %153 = vector.shape_cast %152 : vector<1x1x32xf32> to vector<1x32xf32>
    %c2_98 = arith.constant 2 : index
    %c0_99 = arith.constant 0 : index
    %c0_100 = arith.constant 0 : index
    %154 = vector.load %arg6[%c2_98, %c0_99, %c0_100] : memref<4x1x32xf32, #tpu.memory_space<vmem>>, vector<1x1x32xf32>
    %155 = vector.shape_cast %154 : vector<1x1x32xf32> to vector<1x32xf32>
    %cst_101 = arith.constant dense<0.000000e+00> : vector<8x32xf32>
    %156 = tpu.matmul %0, %151, %cst_101 {dimension_numbers = #tpu.dot_dimension_numbers<[1], [0], [0], [1], [0, 0, 1, 1], [], []>} : vector<8x8xf32>, vector<8x32xf32>, vector<8x32xf32> -> vector<8x32xf32>
    %157 = vector.broadcast %149 : vector<8x1xf32> to vector<8x32xf32>
    %158 = vector.broadcast %153 : vector<1x32xf32> to vector<8x32xf32>
    %159 = arith.mulf %157, %158 : vector<8x32xf32>
    %160 = arith.addf %156, %159 : vector<8x32xf32>
    %161 = vector.broadcast %155 : vector<1x32xf32> to vector<8x32xf32>
    %162 = arith.addf %160, %161 : vector<8x32xf32>
    %cst_102 = arith.constant 0.000000e+00 : f32
    %163 = vector.broadcast %cst_102 : f32 to vector<8x32xf32>
    %164 = arith.cmpf ogt, %162, %163 : vector<8x32xf32>
    %cst_103 = arith.constant 2.000000e-01 : f32
    %165 = vector.broadcast %cst_103 : f32 to vector<8x32xf32>
    %166 = arith.mulf %165, %162 : vector<8x32xf32>
    %167 = arith.select %164, %162, %166 : vector<8x32xi1>, vector<8x32xf32>
    %cst_104 = arith.constant 2.000000e-01 : f32
    %168 = vector.broadcast %cst_104 : f32 to vector<1x32xf32>
    %169 = arith.mulf %168, %153 : vector<1x32xf32>
    %170 = vector.shape_cast %153 : vector<1x32xf32> to vector<1x32xf32>
    %171 = vector.broadcast %170 : vector<1x32xf32> to vector<8x32xf32>
    %172 = vector.shape_cast %169 : vector<1x32xf32> to vector<1x32xf32>
    %173 = vector.broadcast %172 : vector<1x32xf32> to vector<8x32xf32>
    %174 = arith.select %164, %171, %173 : vector<8x32xi1>, vector<8x32xf32>
    %175 = tpu.concatenate %167, %174 in 0 : vector<8x32xf32>, vector<8x32xf32> -> vector<16x32xf32>
    %c2_105 = arith.constant 2 : index
    %c0_106 = arith.constant 0 : index
    %c0_107 = arith.constant 0 : index
    %c0_108 = arith.constant 0 : index
    %176 = vector.load %arg7[%c2_105, %c0_106, %c0_107, %c0_108] : memref<4x2x32x32xf32, #tpu.memory_space<vmem>>, vector<1x1x32x32xf32>
    %177 = vector.shape_cast %176 : vector<1x1x32x32xf32> to vector<32x32xf32>
    %c2_109 = arith.constant 2 : index
    %c0_110 = arith.constant 0 : index
    %c0_111 = arith.constant 0 : index
    %c0_112 = arith.constant 0 : index
    %178 = vector.load %arg8[%c2_109, %c0_110, %c0_111, %c0_112] : memref<4x2x1x32xf32, #tpu.memory_space<vmem>>, vector<1x1x1x32xf32>
    %179 = vector.shape_cast %178 : vector<1x1x1x32xf32> to vector<1x32xf32>
    %cst_113 = arith.constant dense<0.000000e+00> : vector<16x32xf32>
    %180 = tpu.matmul %175, %177, %cst_113 {dimension_numbers = #tpu.dot_dimension_numbers<[1], [0], [0], [1], [0, 0, 1, 1], [], []>} : vector<16x32xf32>, vector<32x32xf32>, vector<16x32xf32> -> vector<16x32xf32>
    %181 = vector.extract_strided_slice %180 {offsets = [0, 0], sizes = [8, 32], strides = [1, 1]} : vector<16x32xf32> to vector<8x32xf32>
    %182 = vector.broadcast %179 : vector<1x32xf32> to vector<8x32xf32>
    %183 = arith.addf %181, %182 : vector<8x32xf32>
    %184 = vector.extract_strided_slice %180 {offsets = [8, 0], sizes = [8, 32], strides = [1, 1]} : vector<16x32xf32> to vector<8x32xf32>
    %cst_114 = arith.constant 0.000000e+00 : f32
    %185 = vector.broadcast %cst_114 : f32 to vector<8x32xf32>
    %186 = arith.cmpf ogt, %183, %185 : vector<8x32xf32>
    %cst_115 = arith.constant 2.000000e-01 : f32
    %187 = vector.broadcast %cst_115 : f32 to vector<8x32xf32>
    %188 = arith.mulf %187, %183 : vector<8x32xf32>
    %189 = arith.select %186, %183, %188 : vector<8x32xi1>, vector<8x32xf32>
    %cst_116 = arith.constant 2.000000e-01 : f32
    %190 = vector.broadcast %cst_116 : f32 to vector<8x32xf32>
    %191 = arith.mulf %190, %184 : vector<8x32xf32>
    %192 = arith.select %186, %184, %191 : vector<8x32xi1>, vector<8x32xf32>
    %193 = tpu.concatenate %189, %192 in 0 : vector<8x32xf32>, vector<8x32xf32> -> vector<16x32xf32>
    %c2_117 = arith.constant 2 : index
    %c1_118 = arith.constant 1 : index
    %c0_119 = arith.constant 0 : index
    %c0_120 = arith.constant 0 : index
    %194 = vector.load %arg7[%c2_117, %c1_118, %c0_119, %c0_120] : memref<4x2x32x32xf32, #tpu.memory_space<vmem>>, vector<1x1x32x32xf32>
    %195 = vector.shape_cast %194 : vector<1x1x32x32xf32> to vector<32x32xf32>
    %c2_121 = arith.constant 2 : index
    %c1_122 = arith.constant 1 : index
    %c0_123 = arith.constant 0 : index
    %c0_124 = arith.constant 0 : index
    %196 = vector.load %arg8[%c2_121, %c1_122, %c0_123, %c0_124] : memref<4x2x1x32xf32, #tpu.memory_space<vmem>>, vector<1x1x1x32xf32>
    %197 = vector.shape_cast %196 : vector<1x1x1x32xf32> to vector<1x32xf32>
    %cst_125 = arith.constant dense<0.000000e+00> : vector<16x32xf32>
    %198 = tpu.matmul %193, %195, %cst_125 {dimension_numbers = #tpu.dot_dimension_numbers<[1], [0], [0], [1], [0, 0, 1, 1], [], []>} : vector<16x32xf32>, vector<32x32xf32>, vector<16x32xf32> -> vector<16x32xf32>
    %199 = vector.extract_strided_slice %198 {offsets = [0, 0], sizes = [8, 32], strides = [1, 1]} : vector<16x32xf32> to vector<8x32xf32>
    %200 = vector.broadcast %197 : vector<1x32xf32> to vector<8x32xf32>
    %201 = arith.addf %199, %200 : vector<8x32xf32>
    %202 = vector.extract_strided_slice %198 {offsets = [8, 0], sizes = [8, 32], strides = [1, 1]} : vector<16x32xf32> to vector<8x32xf32>
    %cst_126 = arith.constant 0.000000e+00 : f32
    %203 = vector.broadcast %cst_126 : f32 to vector<8x32xf32>
    %204 = arith.cmpf ogt, %201, %203 : vector<8x32xf32>
    %cst_127 = arith.constant 2.000000e-01 : f32
    %205 = vector.broadcast %cst_127 : f32 to vector<8x32xf32>
    %206 = arith.mulf %205, %201 : vector<8x32xf32>
    %207 = arith.select %204, %201, %206 : vector<8x32xi1>, vector<8x32xf32>
    %cst_128 = arith.constant 2.000000e-01 : f32
    %208 = vector.broadcast %cst_128 : f32 to vector<8x32xf32>
    %209 = arith.mulf %208, %202 : vector<8x32xf32>
    %210 = arith.select %204, %202, %209 : vector<8x32xi1>, vector<8x32xf32>
    %211 = tpu.concatenate %207, %210 in 0 : vector<8x32xf32>, vector<8x32xf32> -> vector<16x32xf32>
    %c2_129 = arith.constant 2 : index
    %c0_130 = arith.constant 0 : index
    %c0_131 = arith.constant 0 : index
    %212 = vector.load %arg9[%c2_129, %c0_130, %c0_131] : memref<4x32x1xf32, #tpu.memory_space<vmem>>, vector<1x32x1xf32>
    %213 = vector.shape_cast %212 : vector<1x32x1xf32> to vector<32x1xf32>
    %cst_132 = arith.constant dense<0.000000e+00> : vector<16x1xf32>
    %214 = tpu.matmul %211, %213, %cst_132 {dimension_numbers = #tpu.dot_dimension_numbers<[1], [0], [0], [1], [0, 0, 1, 1], [], []>} : vector<16x32xf32>, vector<32x1xf32>, vector<16x1xf32> -> vector<16x1xf32>
    %215 = vector.extract_strided_slice %214 {offsets = [0, 0], sizes = [8, 1], strides = [1, 1]} : vector<16x1xf32> to vector<8x1xf32>
    %c2_133 = arith.constant 2 : index
    %c0_134 = arith.constant 0 : index
    %c0_135 = arith.constant 0 : index
    %216 = vector.load %arg10[%c2_133, %c0_134, %c0_135] : memref<4x1x1xf32, #tpu.memory_space<vmem>>, vector<1x1x1xf32>
    %217 = vector.shape_cast %216 : vector<1x1x1xf32> to vector<1x1xf32>
    %218 = vector.broadcast %217 : vector<1x1xf32> to vector<8x1xf32>
    %219 = arith.addf %215, %218 : vector<8x1xf32>
    %220 = vector.extract_strided_slice %214 {offsets = [8, 0], sizes = [8, 1], strides = [1, 1]} : vector<16x1xf32> to vector<8x1xf32>
    %221 = math.absf %220 : vector<8x1xf32>
    %222 = math.log %221 : vector<8x1xf32>
    %c0_136 = arith.constant 0 : index
    %c3 = arith.constant 3 : index
    %223 = vector.load %arg3[%c0_136, %c3] : memref<8x4xf32, #tpu.memory_space<vmem>>, vector<8x1xf32>
    %c3_137 = arith.constant 3 : index
    %c0_138 = arith.constant 0 : index
    %c0_139 = arith.constant 0 : index
    %224 = vector.load %arg4[%c3_137, %c0_138, %c0_139] : memref<4x8x32xf32, #tpu.memory_space<vmem>>, vector<1x8x32xf32>
    %225 = vector.shape_cast %224 : vector<1x8x32xf32> to vector<8x32xf32>
    %c3_140 = arith.constant 3 : index
    %c0_141 = arith.constant 0 : index
    %c0_142 = arith.constant 0 : index
    %226 = vector.load %arg5[%c3_140, %c0_141, %c0_142] : memref<4x1x32xf32, #tpu.memory_space<vmem>>, vector<1x1x32xf32>
    %227 = vector.shape_cast %226 : vector<1x1x32xf32> to vector<1x32xf32>
    %c3_143 = arith.constant 3 : index
    %c0_144 = arith.constant 0 : index
    %c0_145 = arith.constant 0 : index
    %228 = vector.load %arg6[%c3_143, %c0_144, %c0_145] : memref<4x1x32xf32, #tpu.memory_space<vmem>>, vector<1x1x32xf32>
    %229 = vector.shape_cast %228 : vector<1x1x32xf32> to vector<1x32xf32>
    %cst_146 = arith.constant dense<0.000000e+00> : vector<8x32xf32>
    %230 = tpu.matmul %0, %225, %cst_146 {dimension_numbers = #tpu.dot_dimension_numbers<[1], [0], [0], [1], [0, 0, 1, 1], [], []>} : vector<8x8xf32>, vector<8x32xf32>, vector<8x32xf32> -> vector<8x32xf32>
    %231 = vector.broadcast %223 : vector<8x1xf32> to vector<8x32xf32>
    %232 = vector.broadcast %227 : vector<1x32xf32> to vector<8x32xf32>
    %233 = arith.mulf %231, %232 : vector<8x32xf32>
    %234 = arith.addf %230, %233 : vector<8x32xf32>
    %235 = vector.broadcast %229 : vector<1x32xf32> to vector<8x32xf32>
    %236 = arith.addf %234, %235 : vector<8x32xf32>
    %cst_147 = arith.constant 0.000000e+00 : f32
    %237 = vector.broadcast %cst_147 : f32 to vector<8x32xf32>
    %238 = arith.cmpf ogt, %236, %237 : vector<8x32xf32>
    %cst_148 = arith.constant 2.000000e-01 : f32
    %239 = vector.broadcast %cst_148 : f32 to vector<8x32xf32>
    %240 = arith.mulf %239, %236 : vector<8x32xf32>
    %241 = arith.select %238, %236, %240 : vector<8x32xi1>, vector<8x32xf32>
    %cst_149 = arith.constant 2.000000e-01 : f32
    %242 = vector.broadcast %cst_149 : f32 to vector<1x32xf32>
    %243 = arith.mulf %242, %227 : vector<1x32xf32>
    %244 = vector.shape_cast %227 : vector<1x32xf32> to vector<1x32xf32>
    %245 = vector.broadcast %244 : vector<1x32xf32> to vector<8x32xf32>
    %246 = vector.shape_cast %243 : vector<1x32xf32> to vector<1x32xf32>
    %247 = vector.broadcast %246 : vector<1x32xf32> to vector<8x32xf32>
    %248 = arith.select %238, %245, %247 : vector<8x32xi1>, vector<8x32xf32>
    %249 = tpu.concatenate %241, %248 in 0 : vector<8x32xf32>, vector<8x32xf32> -> vector<16x32xf32>
    %c3_150 = arith.constant 3 : index
    %c0_151 = arith.constant 0 : index
    %c0_152 = arith.constant 0 : index
    %c0_153 = arith.constant 0 : index
    %250 = vector.load %arg7[%c3_150, %c0_151, %c0_152, %c0_153] : memref<4x2x32x32xf32, #tpu.memory_space<vmem>>, vector<1x1x32x32xf32>
    %251 = vector.shape_cast %250 : vector<1x1x32x32xf32> to vector<32x32xf32>
    %c3_154 = arith.constant 3 : index
    %c0_155 = arith.constant 0 : index
    %c0_156 = arith.constant 0 : index
    %c0_157 = arith.constant 0 : index
    %252 = vector.load %arg8[%c3_154, %c0_155, %c0_156, %c0_157] : memref<4x2x1x32xf32, #tpu.memory_space<vmem>>, vector<1x1x1x32xf32>
    %253 = vector.shape_cast %252 : vector<1x1x1x32xf32> to vector<1x32xf32>
    %cst_158 = arith.constant dense<0.000000e+00> : vector<16x32xf32>
    %254 = tpu.matmul %249, %251, %cst_158 {dimension_numbers = #tpu.dot_dimension_numbers<[1], [0], [0], [1], [0, 0, 1, 1], [], []>} : vector<16x32xf32>, vector<32x32xf32>, vector<16x32xf32> -> vector<16x32xf32>
    %255 = vector.extract_strided_slice %254 {offsets = [0, 0], sizes = [8, 32], strides = [1, 1]} : vector<16x32xf32> to vector<8x32xf32>
    %256 = vector.broadcast %253 : vector<1x32xf32> to vector<8x32xf32>
    %257 = arith.addf %255, %256 : vector<8x32xf32>
    %258 = vector.extract_strided_slice %254 {offsets = [8, 0], sizes = [8, 32], strides = [1, 1]} : vector<16x32xf32> to vector<8x32xf32>
    %cst_159 = arith.constant 0.000000e+00 : f32
    %259 = vector.broadcast %cst_159 : f32 to vector<8x32xf32>
    %260 = arith.cmpf ogt, %257, %259 : vector<8x32xf32>
    %cst_160 = arith.constant 2.000000e-01 : f32
    %261 = vector.broadcast %cst_160 : f32 to vector<8x32xf32>
    %262 = arith.mulf %261, %257 : vector<8x32xf32>
    %263 = arith.select %260, %257, %262 : vector<8x32xi1>, vector<8x32xf32>
    %cst_161 = arith.constant 2.000000e-01 : f32
    %264 = vector.broadcast %cst_161 : f32 to vector<8x32xf32>
    %265 = arith.mulf %264, %258 : vector<8x32xf32>
    %266 = arith.select %260, %258, %265 : vector<8x32xi1>, vector<8x32xf32>
    %267 = tpu.concatenate %263, %266 in 0 : vector<8x32xf32>, vector<8x32xf32> -> vector<16x32xf32>
    %c3_162 = arith.constant 3 : index
    %c1_163 = arith.constant 1 : index
    %c0_164 = arith.constant 0 : index
    %c0_165 = arith.constant 0 : index
    %268 = vector.load %arg7[%c3_162, %c1_163, %c0_164, %c0_165] : memref<4x2x32x32xf32, #tpu.memory_space<vmem>>, vector<1x1x32x32xf32>
    %269 = vector.shape_cast %268 : vector<1x1x32x32xf32> to vector<32x32xf32>
    %c3_166 = arith.constant 3 : index
    %c1_167 = arith.constant 1 : index
    %c0_168 = arith.constant 0 : index
    %c0_169 = arith.constant 0 : index
    %270 = vector.load %arg8[%c3_166, %c1_167, %c0_168, %c0_169] : memref<4x2x1x32xf32, #tpu.memory_space<vmem>>, vector<1x1x1x32xf32>
    %271 = vector.shape_cast %270 : vector<1x1x1x32xf32> to vector<1x32xf32>
    %cst_170 = arith.constant dense<0.000000e+00> : vector<16x32xf32>
    %272 = tpu.matmul %267, %269, %cst_170 {dimension_numbers = #tpu.dot_dimension_numbers<[1], [0], [0], [1], [0, 0, 1, 1], [], []>} : vector<16x32xf32>, vector<32x32xf32>, vector<16x32xf32> -> vector<16x32xf32>
    %273 = vector.extract_strided_slice %272 {offsets = [0, 0], sizes = [8, 32], strides = [1, 1]} : vector<16x32xf32> to vector<8x32xf32>
    %274 = vector.broadcast %271 : vector<1x32xf32> to vector<8x32xf32>
    %275 = arith.addf %273, %274 : vector<8x32xf32>
    %276 = vector.extract_strided_slice %272 {offsets = [8, 0], sizes = [8, 32], strides = [1, 1]} : vector<16x32xf32> to vector<8x32xf32>
    %cst_171 = arith.constant 0.000000e+00 : f32
    %277 = vector.broadcast %cst_171 : f32 to vector<8x32xf32>
    %278 = arith.cmpf ogt, %275, %277 : vector<8x32xf32>
    %cst_172 = arith.constant 2.000000e-01 : f32
    %279 = vector.broadcast %cst_172 : f32 to vector<8x32xf32>
    %280 = arith.mulf %279, %275 : vector<8x32xf32>
    %281 = arith.select %278, %275, %280 : vector<8x32xi1>, vector<8x32xf32>
    %cst_173 = arith.constant 2.000000e-01 : f32
    %282 = vector.broadcast %cst_173 : f32 to vector<8x32xf32>
    %283 = arith.mulf %282, %276 : vector<8x32xf32>
    %284 = arith.select %278, %276, %283 : vector<8x32xi1>, vector<8x32xf32>
    %285 = tpu.concatenate %281, %284 in 0 : vector<8x32xf32>, vector<8x32xf32> -> vector<16x32xf32>
    %c3_174 = arith.constant 3 : index
    %c0_175 = arith.constant 0 : index
    %c0_176 = arith.constant 0 : index
    %286 = vector.load %arg9[%c3_174, %c0_175, %c0_176] : memref<4x32x1xf32, #tpu.memory_space<vmem>>, vector<1x32x1xf32>
    %287 = vector.shape_cast %286 : vector<1x32x1xf32> to vector<32x1xf32>
    %cst_177 = arith.constant dense<0.000000e+00> : vector<16x1xf32>
    %288 = tpu.matmul %285, %287, %cst_177 {dimension_numbers = #tpu.dot_dimension_numbers<[1], [0], [0], [1], [0, 0, 1, 1], [], []>} : vector<16x32xf32>, vector<32x1xf32>, vector<16x1xf32> -> vector<16x1xf32>
    %289 = vector.extract_strided_slice %288 {offsets = [0, 0], sizes = [8, 1], strides = [1, 1]} : vector<16x1xf32> to vector<8x1xf32>
    %c3_178 = arith.constant 3 : index
    %c0_179 = arith.constant 0 : index
    %c0_180 = arith.constant 0 : index
    %290 = vector.load %arg10[%c3_178, %c0_179, %c0_180] : memref<4x1x1xf32, #tpu.memory_space<vmem>>, vector<1x1x1xf32>
    %291 = vector.shape_cast %290 : vector<1x1x1xf32> to vector<1x1xf32>
    %292 = vector.broadcast %291 : vector<1x1xf32> to vector<8x1xf32>
    %293 = arith.addf %289, %292 : vector<8x1xf32>
    %294 = vector.extract_strided_slice %288 {offsets = [8, 0], sizes = [8, 1], strides = [1, 1]} : vector<16x1xf32> to vector<8x1xf32>
    %295 = math.absf %294 : vector<8x1xf32>
    %296 = math.log %295 : vector<8x1xf32>
    %297 = tpu.concatenate %71, %145, %219, %293 in 1 : vector<8x1xf32>, vector<8x1xf32>, vector<8x1xf32>, vector<8x1xf32> -> vector<8x4xf32>
    %c0_181 = arith.constant 0 : index
    %c0_182 = arith.constant 0 : index
    %298 = vector.load %arg11[%c0_181, %c0_182] : memref<8x4xf32, #tpu.memory_space<vmem>>, vector<8x4xf32>
    tpu.vector_store %arg11[%c0_181, %c0_182], %297 {strides = array<i32>} : memref<8x4xf32, #tpu.memory_space<vmem>>, vector<8x4xf32>,
    %299 = tpu.concatenate %74, %148, %222, %296 in 1 : vector<8x1xf32>, vector<8x1xf32>, vector<8x1xf32>, vector<8x1xf32> -> vector<8x4xf32>
    %c0_183 = arith.constant 0 : index
    %c0_184 = arith.constant 0 : index
    %300 = vector.load %arg12[%c0_183, %c0_184] : memref<8x4xf32, #tpu.memory_space<vmem>>, vector<8x4xf32>
    tpu.vector_store %arg12[%c0_183, %c0_184], %299 {strides = array<i32>} : memref<8x4xf32, #tpu.memory_space<vmem>>, vector<8x4xf32>,
    return
  }
  func.func @transform_0(%arg0: i32, %arg1: i32) -> (i32, i32) {
    %c0_i32 = arith.constant 0 : i32
    %c0_i32_0 = arith.constant 0 : i32
    return %arg1, %c0_i32 : i32, i32
  }
  func.func @transform_1(%arg0: i32, %arg1: i32) -> (i32, i32) {
    %c0_i32 = arith.constant 0 : i32
    return %arg1, %arg0 : i32, i32
  }
  func.func @transform_2(%arg0: i32, %arg1: i32) -> (i32, i32, i32) {
    %c0_i32 = arith.constant 0 : i32
    %c0_i32_0 = arith.constant 0 : i32
    %c0_i32_1 = arith.constant 0 : i32
    return %arg0, %c0_i32, %c0_i32_0 : i32, i32, i32
  }
  func.func @transform_3(%arg0: i32, %arg1: i32) -> (i32, i32, i32) {
    %c0_i32 = arith.constant 0 : i32
    %c0_i32_0 = arith.constant 0 : i32
    %c0_i32_1 = arith.constant 0 : i32
    return %arg0, %c0_i32, %c0_i32_0 : i32, i32, i32
  }
  func.func @transform_4(%arg0: i32, %arg1: i32) -> (i32, i32, i32) {
    %c0_i32 = arith.constant 0 : i32
    %c0_i32_0 = arith.constant 0 : i32
    %c0_i32_1 = arith.constant 0 : i32
    return %arg0, %c0_i32, %c0_i32_0 : i32, i32, i32
  }
  func.func @transform_5(%arg0: i32, %arg1: i32) -> (i32, i32, i32, i32) {
    %c0_i32 = arith.constant 0 : i32
    %c0_i32_0 = arith.constant 0 : i32
    %c0_i32_1 = arith.constant 0 : i32
    %c0_i32_2 = arith.constant 0 : i32
    return %arg0, %c0_i32, %c0_i32_0, %c0_i32_1 : i32, i32, i32, i32
  }
  func.func @transform_6(%arg0: i32, %arg1: i32) -> (i32, i32, i32, i32) {
    %c0_i32 = arith.constant 0 : i32
    %c0_i32_0 = arith.constant 0 : i32
    %c0_i32_1 = arith.constant 0 : i32
    %c0_i32_2 = arith.constant 0 : i32
    return %arg0, %c0_i32, %c0_i32_0, %c0_i32_1 : i32, i32, i32, i32
  }
  func.func @transform_7(%arg0: i32, %arg1: i32) -> (i32, i32, i32) {
    %c0_i32 = arith.constant 0 : i32
    %c0_i32_0 = arith.constant 0 : i32
    %c0_i32_1 = arith.constant 0 : i32
    return %arg0, %c0_i32, %c0_i32_0 : i32, i32, i32
  }
  func.func @transform_8(%arg0: i32, %arg1: i32) -> (i32, i32, i32) {
    %c0_i32 = arith.constant 0 : i32
    %c0_i32_0 = arith.constant 0 : i32
    %c0_i32_1 = arith.constant 0 : i32
    return %arg0, %c0_i32, %c0_i32_0 : i32, i32, i32
  }
  func.func @transform_9(%arg0: i32, %arg1: i32) -> (i32, i32) {
    %c0_i32 = arith.constant 0 : i32
    return %arg1, %arg0 : i32, i32
  }
  func.func @transform_10(%arg0: i32, %arg1: i32) -> (i32, i32) {
    %c0_i32 = arith.constant 0 : i32
    return %arg1, %arg0 : i32, i32
  }
}

</mosaic_0001>

<llo_original>
// kernel: tpu_custom_call.1
$region0: #{tpu_custom_call.1}
  #allocation0 [shape = 'u32[]', space=smem, size = 0x4, offset = 0x4, fixed_abs, tag = 'smem constant byte address 0x4 - core index']
  #allocation1 [shape = 'u32[144,128]{1,0:T(1,128)}', space=vmem, size = 0x12000, scoped, tag = 'internal scratch']
  %s0 = inlined_call_operand.vmem [shape: f32[24,8], index: 0, kind: input, shape index: {}]
  %s1 = inlined_call_operand.vmem [shape: f32[24,4], index: 1, kind: input, shape index: {}]
  %s2 = inlined_call_operand.vmem [shape: f32[4,8,32], index: 2, kind: input, shape index: {}]
  %s3 = inlined_call_operand.vmem [shape: f32[4,1,32], index: 3, kind: input, shape index: {}]
  %s4 = inlined_call_operand.vmem [shape: f32[4,1,32], index: 4, kind: input, shape index: {}]
  %s5 = inlined_call_operand.hbm [shape: f32[4,2,32,32], index: 5, kind: input, shape index: {}]
  %s6 = inlined_call_operand.vmem [shape: f32[4,2,1,32], index: 6, kind: input, shape index: {}]
  %s7 = inlined_call_operand.vmem [shape: f32[4,32,1], index: 7, kind: input, shape index: {}]
  %s8 = inlined_call_operand.vmem [shape: f32[4,1,1], index: 8, kind: input, shape index: {}]
  %s9 = inlined_call_operand.vmem [shape: f32[24,4], index: 9, kind: output, shape index: {0}]
  %s10 = inlined_call_operand.vmem [shape: f32[24,4], index: 10, kind: output, shape index: {1}]
  %11 = xla_tuple %s9, %s10
  %s12 = sld [smem:[#allocation0]]
  $region81: #{tpu_custom_call.1} parent=0
    _
  %s14 = ssub.s32 1, %s12
  %s15 = scalar_select 0, %s14, %s12
  $region1: #{tpu_custom_call.1} parent=0
    #allocation2 [shape = 'u8[131072]{0}', space=vmem, size = 0x20000, scoped, tag = 'input window, operand 5, single buffered']
    #allocation3 [shape = 's32[2]{0}', space=sflag, size = 0x8, scoped, tag = 'scoped memory for tpu_custom_call.1']
    %16 = vsyncpa [#allocation3], 0
    loop: start=0, step=1, limit=5
    $region2: #{tpu_custom_call.1} parent=1 // loop_pre_header
      _
    $region3: #{tpu_custom_call.1} parent=1 // loop_header
      %s18 = sphi 0, %s22
      %p19 = scmp.ge.s32.totalorder %s18, 5
      %s25 = sphi 0, %s37
      %s26 = sphi 0, %s33
      %s27 = sphi 0, %s25
      %s28 = sphi 0, %s26
      %s29 = sphi 0, %s27
      %s30 = sphi 0, %s28
      %s40 = sphi 0, %s42
      %s43 = sphi 0, %s40
      %s44 = sphi 0, %s43
      %s60 = sphi 0, %s44
      %s68 = sphi 0, %s70
      %s71 = sphi 0, %s68
      %s72 = sphi 0, %s71
      %s88 = sphi 0, %s72
      %s94 = sphi 0, %s96
      %s97 = sphi 0, %s94
      %s98 = sphi 0, %s97
      %s114 = sphi 0, %s98
      %s120 = sphi 0, %s122
      %s123 = sphi 0, %s120
      %s124 = sphi 0, %s123
      %s140 = sphi 0, %s124
      %s146 = sphi 0, %s148
      %s149 = sphi 0, %s146
      %s150 = sphi 0, %s149
      %s166 = sphi 0, %s150
      %s172 = sphi 0, %s174
      %s175 = sphi 0, %s172
      %s176 = sphi 0, %s175
      %s192 = sphi 0, %s176
      %s198 = sphi 0, %s200
      %s201 = sphi 0, %s198
      %s202 = sphi 0, %s201
      %s218 = sphi 0, %s202
      %s224 = sphi 0, %s226
      %s227 = sphi 0, %s224
      %s228 = sphi 0, %s227
      %s244 = sphi 0, %s228
      %s250 = sphi 0, %s252
      %s253 = sphi 0, %s250
      %s254 = sphi 0, %s253
      %s270 = sphi 0, %s254
      %s278 = sphi 0, %s280
      %s281 = sphi 0, %s278
      %s282 = sphi 0, %s281
      %s298 = sphi 0, %s282
      %s306 = sphi 0, %s308
      %s309 = sphi 0, %s306
      %s310 = sphi 0, %s309
      %s326 = sphi 0, %s310
    $region4: #{tpu_custom_call.1} parent=1 // loop_header_branch
      %21 = sbr.rel (%p19) target = $region8
    $region5: #{tpu_custom_call.1} parent=1 // loop_body
      %s23 = ssub.s32 %s18, 1
      %s24 = ssub.s32 %s18, 2
      %s31 = sadd.s32 1, %s26
      %p32 = scmp.ge.s32.totalorder %s31, 3
      %s33 = scalar_select %p32, 0, %s31
      %s34 = sadd.s32 1, %s25
      %s35 = scalar_select %p32, %s34, %s25
      %p36 = scmp.ge.s32.totalorder %s35, 1
      %s37 = scalar_select %p36, 0, %s35
      %s38 = ssub.s32 %s26, %s33
      %p39 = scmp.eq.s32.totalorder %s38, 0
      %s41 = sadd.s32 %s40, 1
      %s42 = scalar_select %p39, %s40, %s41
      %p45 = pneg %p39
      %p46 = scmp.eq.s32.totalorder %s18, 2
      %p47 = por %p45, %p46
      %p48 = scmp.ne.s32.totalorder %s40, %s43
      %p49 = scmp.eq.s32.totalorder %s18, 0
      %p50 = por %p48, %p49
      %p51 = scmp.ne.s32.totalorder %s40, %s43
      %p52 = scmp.eq.s32.totalorder %s23, 2
      %p53 = por %p51, %p52
      %p54 = scmp.ne.s32.totalorder %s43, %s44
      %p55 = scmp.eq.s32.totalorder %s23, 0
      %p56 = por %p54, %p55
      %p57 = scmp.ne.s32.totalorder %s43, %s44
      %p58 = scmp.eq.s32.totalorder %s24, 2
      %p59 = por %p57, %p58
      %p61 = scmp.ne.s32.totalorder %s44, %s60
      %p62 = scmp.eq.s32.totalorder %s24, 0
      %p63 = por %p61, %p62
      %s64 = ssub.s32 %s26, %s33
      %s65 = ssub.s32 %s25, %s37
      %s66 = sor.u32 %s64, %s65
      %p67 = scmp.eq.s32.totalorder %s66, 0
      %s69 = sadd.s32 %s68, 1
      %s70 = scalar_select %p67, %s68, %s69
      %p73 = pneg %p67
      %p74 = scmp.eq.s32.totalorder %s18, 2
      %p75 = por %p73, %p74
      %p76 = scmp.ne.s32.totalorder %s68, %s71
      %p77 = scmp.eq.s32.totalorder %s18, 0
      %p78 = por %p76, %p77
      %p79 = scmp.ne.s32.totalorder %s68, %s71
      %p80 = scmp.eq.s32.totalorder %s23, 2
      %p81 = por %p79, %p80
      %p82 = scmp.ne.s32.totalorder %s71, %s72
      %p83 = scmp.eq.s32.totalorder %s23, 0
      %p84 = por %p82, %p83
      %p85 = scmp.ne.s32.totalorder %s71, %s72
      %p86 = scmp.eq.s32.totalorder %s24, 2
      %p87 = por %p85, %p86
      %p89 = scmp.ne.s32.totalorder %s72, %s88
      %p90 = scmp.eq.s32.totalorder %s24, 0
      %p91 = por %p89, %p90
      %s92 = ssub.s32 %s25, %s37
      %p93 = scmp.eq.s32.totalorder %s92, 0
      %s95 = sadd.s32 %s94, 1
      %s96 = scalar_select %p93, %s94, %s95
      %p99 = pneg %p93
      %p100 = scmp.eq.s32.totalorder %s18, 2
      %p101 = por %p99, %p100
      %p102 = scmp.ne.s32.totalorder %s94, %s97
      %p103 = scmp.eq.s32.totalorder %s18, 0
      %p104 = por %p102, %p103
      %p105 = scmp.ne.s32.totalorder %s94, %s97
      %p106 = scmp.eq.s32.totalorder %s23, 2
      %p107 = por %p105, %p106
      %p108 = scmp.ne.s32.totalorder %s97, %s98
      %p109 = scmp.eq.s32.totalorder %s23, 0
      %p110 = por %p108, %p109
      %p111 = scmp.ne.s32.totalorder %s97, %s98
      %p112 = scmp.eq.s32.totalorder %s24, 2
      %p113 = por %p111, %p112
      %p115 = scmp.ne.s32.totalorder %s98, %s114
      %p116 = scmp.eq.s32.totalorder %s24, 0
      %p117 = por %p115, %p116
      %s118 = ssub.s32 %s25, %s37
      %p119 = scmp.eq.s32.totalorder %s118, 0
      %s121 = sadd.s32 %s120, 1
      %s122 = scalar_select %p119, %s120, %s121
      %p125 = pneg %p119
      %p126 = scmp.eq.s32.totalorder %s18, 2
      %p127 = por %p125, %p126
      %p128 = scmp.ne.s32.totalorder %s120, %s123
      %p129 = scmp.eq.s32.totalorder %s18, 0
      %p130 = por %p128, %p129
      %p131 = scmp.ne.s32.totalorder %s120, %s123
      %p132 = scmp.eq.s32.totalorder %s23, 2
      %p133 = por %p131, %p132
      %p134 = scmp.ne.s32.totalorder %s123, %s124
      %p135 = scmp.eq.s32.totalorder %s23, 0
      %p136 = por %p134, %p135
      %p137 = scmp.ne.s32.totalorder %s123, %s124
      %p138 = scmp.eq.s32.totalorder %s24, 2
      %p139 = por %p137, %p138
      %p141 = scmp.ne.s32.totalorder %s124, %s140
      %p142 = scmp.eq.s32.totalorder %s24, 0
      %p143 = por %p141, %p142
      %s144 = ssub.s32 %s25, %s37
      %p145 = scmp.eq.s32.totalorder %s144, 0
      %s147 = sadd.s32 %s146, 1
      %s148 = scalar_select %p145, %s146, %s147
      %p151 = pneg %p145
      %p152 = scmp.eq.s32.totalorder %s18, 2
      %p153 = por %p151, %p152
      %p154 = scmp.ne.s32.totalorder %s146, %s149
      %p155 = scmp.eq.s32.totalorder %s18, 0
      %p156 = por %p154, %p155
      %p157 = scmp.ne.s32.totalorder %s146, %s149
      %p158 = scmp.eq.s32.totalorder %s23, 2
      %p159 = por %p157, %p158
      %p160 = scmp.ne.s32.totalorder %s149, %s150
      %p161 = scmp.eq.s32.totalorder %s23, 0
      %p162 = por %p160, %p161
      %p163 = scmp.ne.s32.totalorder %s149, %s150
      %p164 = scmp.eq.s32.totalorder %s24, 2
      %p165 = por %p163, %p164
      %p167 = scmp.ne.s32.totalorder %s150, %s166
      %p168 = scmp.eq.s32.totalorder %s24, 0
      %p169 = por %p167, %p168
      %s170 = ssub.s32 %s25, %s37
      %p171 = scmp.eq.s32.totalorder %s170, 0
      %s173 = sadd.s32 %s172, 1
      %s174 = scalar_select %p171, %s172, %s173
      %p177 = pneg %p171
      %p178 = scmp.eq.s32.totalorder %s18, 2
      %p179 = por %p177, %p178
      %p180 = scmp.ne.s32.totalorder %s172, %s175
      %p181 = scmp.eq.s32.totalorder %s18, 0
      %p182 = por %p180, %p181
      %p183 = scmp.ne.s32.totalorder %s172, %s175
      %p184 = scmp.eq.s32.totalorder %s23, 2
      %p185 = por %p183, %p184
      %p186 = scmp.ne.s32.totalorder %s175, %s176
      %p187 = scmp.eq.s32.totalorder %s23, 0
      %p188 = por %p186, %p187
      %p189 = scmp.ne.s32.totalorder %s175, %s176
      %p190 = scmp.eq.s32.totalorder %s24, 2
      %p191 = por %p189, %p190
      %p193 = scmp.ne.s32.totalorder %s176, %s192
      %p194 = scmp.eq.s32.totalorder %s24, 0
      %p195 = por %p193, %p194
      %s196 = ssub.s32 %s25, %s37
      %p197 = scmp.eq.s32.totalorder %s196, 0
      %s199 = sadd.s32 %s198, 1
      %s200 = scalar_select %p197, %s198, %s199
      %p203 = pneg %p197
      %p204 = scmp.eq.s32.totalorder %s18, 2
      %p205 = por %p203, %p204
      %p206 = scmp.ne.s32.totalorder %s198, %s201
      %p207 = scmp.eq.s32.totalorder %s18, 0
      %p208 = por %p206, %p207
      %p209 = scmp.ne.s32.totalorder %s198, %s201
      %p210 = scmp.eq.s32.totalorder %s23, 2
      %p211 = por %p209, %p210
      %p212 = scmp.ne.s32.totalorder %s201, %s202
      %p213 = scmp.eq.s32.totalorder %s23, 0
      %p214 = por %p212, %p213
      %p215 = scmp.ne.s32.totalorder %s201, %s202
      %p216 = scmp.eq.s32.totalorder %s24, 2
      %p217 = por %p215, %p216
      %p219 = scmp.ne.s32.totalorder %s202, %s218
      %p220 = scmp.eq.s32.totalorder %s24, 0
      %p221 = por %p219, %p220
      %s222 = ssub.s32 %s25, %s37
      %p223 = scmp.eq.s32.totalorder %s222, 0
      %s225 = sadd.s32 %s224, 1
      %s226 = scalar_select %p223, %s224, %s225
      %p229 = pneg %p223
      %p230 = scmp.eq.s32.totalorder %s18, 2
      %p231 = por %p229, %p230
      %p232 = scmp.ne.s32.totalorder %s224, %s227
      %p233 = scmp.eq.s32.totalorder %s18, 0
      %p234 = por %p232, %p233
      %p235 = scmp.ne.s32.totalorder %s224, %s227
      %p236 = scmp.eq.s32.totalorder %s23, 2
      %p237 = por %p235, %p236
      %p238 = scmp.ne.s32.totalorder %s227, %s228
      %p239 = scmp.eq.s32.totalorder %s23, 0
      %p240 = por %p238, %p239
      %p241 = scmp.ne.s32.totalorder %s227, %s228
      %p242 = scmp.eq.s32.totalorder %s24, 2
      %p243 = por %p241, %p242
      %p245 = scmp.ne.s32.totalorder %s228, %s244
      %p246 = scmp.eq.s32.totalorder %s24, 0
      %p247 = por %p245, %p246
      %s248 = ssub.s32 %s25, %s37
      %p249 = scmp.eq.s32.totalorder %s248, 0
      %s251 = sadd.s32 %s250, 1
      %s252 = scalar_select %p249, %s250, %s251
      %p255 = pneg %p249
      %p256 = scmp.eq.s32.totalorder %s18, 2
      %p257 = por %p255, %p256
      %p258 = scmp.ne.s32.totalorder %s250, %s253
      %p259 = scmp.eq.s32.totalorder %s18, 0
      %p260 = por %p258, %p259
      %p261 = scmp.ne.s32.totalorder %s250, %s253
      %p262 = scmp.eq.s32.totalorder %s23, 2
      %p263 = por %p261, %p262
      %p264 = scmp.ne.s32.totalorder %s253, %s254
      %p265 = scmp.eq.s32.totalorder %s23, 0
      %p266 = por %p264, %p265
      %p267 = scmp.ne.s32.totalorder %s253, %s254
      %p268 = scmp.eq.s32.totalorder %s24, 2
      %p269 = por %p267, %p268
      %p271 = scmp.ne.s32.totalorder %s254, %s270
      %p272 = scmp.eq.s32.totalorder %s24, 0
      %p273 = por %p271, %p272
      %s274 = ssub.s32 %s26, %s33
      %s275 = ssub.s32 %s25, %s37
      %s276 = sor.u32 %s274, %s275
      %p277 = scmp.eq.s32.totalorder %s276, 0
      %s279 = sadd.s32 %s278, 1
      %s280 = scalar_select %p277, %s278, %s279
      %p283 = pneg %p277
      %p284 = scmp.eq.s32.totalorder %s18, 2
      %p285 = por %p283, %p284
      %p286 = scmp.ne.s32.totalorder %s278, %s281
      %p287 = scmp.eq.s32.totalorder %s18, 0
      %p288 = por %p286, %p287
      %p289 = scmp.ne.s32.totalorder %s278, %s281
      %p290 = scmp.eq.s32.totalorder %s23, 2
      %p291 = por %p289, %p290
      %p292 = scmp.ne.s32.totalorder %s281, %s282
      %p293 = scmp.eq.s32.totalorder %s23, 0
      %p294 = por %p292, %p293
      %p295 = scmp.ne.s32.totalorder %s281, %s282
      %p296 = scmp.eq.s32.totalorder %s24, 2
      %p297 = por %p295, %p296
      %p299 = scmp.ne.s32.totalorder %s282, %s298
      %p300 = scmp.eq.s32.totalorder %s24, 0
      %p301 = por %p299, %p300
      %s302 = ssub.s32 %s26, %s33
      %s303 = ssub.s32 %s25, %s37
      %s304 = sor.u32 %s302, %s303
      %p305 = scmp.eq.s32.totalorder %s304, 0
      %s307 = sadd.s32 %s306, 1
      %s308 = scalar_select %p305, %s306, %s307
      %p311 = pneg %p305
      %p312 = scmp.eq.s32.totalorder %s18, 2
      %p313 = por %p311, %p312
      %p314 = scmp.ne.s32.totalorder %s306, %s309
      %p315 = scmp.eq.s32.totalorder %s18, 0
      %p316 = por %p314, %p315
      %p317 = scmp.ne.s32.totalorder %s306, %s309
      %p318 = scmp.eq.s32.totalorder %s23, 2
      %p319 = por %p317, %p318
      %p320 = scmp.ne.s32.totalorder %s309, %s310
      %p321 = scmp.eq.s32.totalorder %s23, 0
      %p322 = por %p320, %p321
      %p323 = scmp.ne.s32.totalorder %s309, %s310
      %p324 = scmp.eq.s32.totalorder %s24, 2
      %p325 = por %p323, %p324
      %p327 = scmp.ne.s32.totalorder %s310, %s326
      %p328 = scmp.eq.s32.totalorder %s24, 0
      %p329 = por %p327, %p328
      %p330 = scmp.le.s32.totalorder 1, %s18
      %p331 = scmp.lt.s32.totalorder %s18, 4
      %p332 = pnand %p330, %p331
      %p333 = pneg %p332
      // Predicated region
      $region9: #{tpu_custom_call.1} parent=5 // pred_check
        _
      $region10: #{tpu_custom_call.1} parent=5 // pred_check_branch
        %335 = sbr.rel (%p332) target = $region12
      $region11: #{tpu_custom_call.1} parent=5 // pred_region
        %s336 = ssub.s32 %s18, 1
        // Predicated region
        $region13: #{tpu_custom_call.1} parent=11 // pred_check
          %p337 = pneg %p110
        $region14: #{tpu_custom_call.1} parent=11 // pred_check_branch
          %339 = sbr.rel (%p337) target = $region16
        $region15: #{tpu_custom_call.1} parent=11 // pred_region
          %s340 = smul.u32 4, %s27
          %p341 = scmp.lt.s32.totalorder %s340, 3
          %s342 = scalar_select %p341, %s340, 3
          %s343 = smul.addr %s342, 8
          %s344 = scalar_lea.vmem %s2, %s343
          %s345 = smul.u32 4, %s27
        $region16: #{tpu_custom_call.1} parent=11 // pred_fallthru
          _
        // Predicated region
        $region17: #{tpu_custom_call.1} parent=11 // pred_check
          %p346 = pneg %p136
        $region18: #{tpu_custom_call.1} parent=11 // pred_check_branch
          %348 = sbr.rel (%p346) target = $region20
        $region19: #{tpu_custom_call.1} parent=11 // pred_region
          %s349 = smul.u32 4, %s27
          %p350 = scmp.lt.s32.totalorder %s349, 3
          %s351 = scalar_select %p350, %s349, 3
          %s352 = scalar_lea.vmem %s3, %s351
          %s353 = smul.u32 4, %s27
        $region20: #{tpu_custom_call.1} parent=11 // pred_fallthru
          _
        // Predicated region
        $region21: #{tpu_custom_call.1} parent=11 // pred_check
          %p354 = pneg %p162
        $region22: #{tpu_custom_call.1} parent=11 // pred_check_branch
          %356 = sbr.rel (%p354) target = $region24
        $region23: #{tpu_custom_call.1} parent=11 // pred_region
          %s357 = smul.u32 4, %s27
          %p358 = scmp.lt.s32.totalorder %s357, 3
          %s359 = scalar_select %p358, %s357, 3
          %s360 = scalar_lea.vmem %s4, %s359
          %s361 = smul.u32 4, %s27
        $region24: #{tpu_custom_call.1} parent=11 // pred_fallthru
          _
        // Predicated region
        $region25: #{tpu_custom_call.1} parent=11 // pred_check
          %p362 = pneg %p188
        $region26: #{tpu_custom_call.1} parent=11 // pred_check_branch
          %364 = sbr.rel (%p362) target = $region28
        $region27: #{tpu_custom_call.1} parent=11 // pred_region
          %s365 = smul.u32 4, %s27
          %s367 = ssub.s32 4096, 4096
          %368 = vsyncadd [#allocation3], %s367
          %s369 = smul.addr %s365, 8
          %s370 = smul.addr %s369, 128
          %s371 = scalar_lea.hbm %s5, %s370
          %s372 = sshll.u32 [#allocation2], 4
          %s373 = int_to_ptr.vmem [resolvable:$true] %s372
          %378 = dma.hbm_to_vmem [thread:$0]  %s371, 4096, %s373, [#allocation3], 128, 128, 8
        $region28: #{tpu_custom_call.1} parent=11 // pred_fallthru
          _
        // Predicated region
        $region29: #{tpu_custom_call.1} parent=11 // pred_check
          %p379 = pneg %p214
        $region30: #{tpu_custom_call.1} parent=11 // pred_check_branch
          %381 = sbr.rel (%p379) target = $region32
        $region31: #{tpu_custom_call.1} parent=11 // pred_region
          %s382 = smul.u32 4, %s27
          %p383 = scmp.lt.s32.totalorder %s382, 3
          %s384 = scalar_select %p383, %s382, 3
          %s385 = smul.addr %s384, 2
          %s386 = scalar_lea.vmem %s6, %s385
          %s387 = smul.u32 4, %s27
        $region32: #{tpu_custom_call.1} parent=11 // pred_fallthru
          _
        // Predicated region
        $region33: #{tpu_custom_call.1} parent=11 // pred_check
          %p388 = pneg %p240
        $region34: #{tpu_custom_call.1} parent=11 // pred_check_branch
          %390 = sbr.rel (%p388) target = $region36
        $region35: #{tpu_custom_call.1} parent=11 // pred_region
          %s391 = smul.u32 4, %s27
          %p392 = scmp.lt.s32.totalorder %s391, 3
          %s393 = scalar_select %p392, %s391, 3
          %s394 = smul.addr %s393, 4
          %s395 = smul.addr %s394, 8
          %s396 = scalar_lea.vmem %s7, %s395
          %s397 = smul.u32 4, %s27
        $region36: #{tpu_custom_call.1} parent=11 // pred_fallthru
          _
        // Predicated region
        $region37: #{tpu_custom_call.1} parent=11 // pred_check
          %p398 = pneg %p266
        $region38: #{tpu_custom_call.1} parent=11 // pred_check_branch
          %400 = sbr.rel (%p398) target = $region40
        $region39: #{tpu_custom_call.1} parent=11 // pred_region
          %s401 = smul.u32 4, %s27
          %p402 = scmp.lt.s32.totalorder %s401, 3
          %s403 = scalar_select %p402, %s401, 3
          %s404 = scalar_lea.vmem %s8, %s403
          %s405 = smul.u32 4, %s27
        $region40: #{tpu_custom_call.1} parent=11 // pred_fallthru
          _
      $region12: #{tpu_custom_call.1} parent=5 // pred_fallthru
        _
      %p406 = scmp.lt.s32.totalorder %s18, 3
      // Predicated region
      $region41: #{tpu_custom_call.1} parent=5 // pred_check
        %p407 = pneg %p406
      $region42: #{tpu_custom_call.1} parent=5 // pred_check_branch
        %409 = sbr.rel (%p407) target = $region44
      $region43: #{tpu_custom_call.1} parent=5 // pred_region
        // Predicated region
        $region45: #{tpu_custom_call.1} parent=43 // pred_check
          %p410 = pneg %p50
        $region46: #{tpu_custom_call.1} parent=43 // pred_check_branch
          %412 = sbr.rel (%p410) target = $region48
        $region47: #{tpu_custom_call.1} parent=43 // pred_region
          %p413 = scmp.lt.s32.totalorder %s26, 2
          %s414 = scalar_select %p413, %s26, 2
          %s415 = smul.addr %s414, 8
          %s416 = scalar_lea.vmem %s0, %s415
        $region48: #{tpu_custom_call.1} parent=43 // pred_fallthru
          _
        // Predicated region
        $region49: #{tpu_custom_call.1} parent=43 // pred_check
          %p417 = pneg %p78
        $region50: #{tpu_custom_call.1} parent=43 // pred_check_branch
          %419 = sbr.rel (%p417) target = $region52
        $region51: #{tpu_custom_call.1} parent=43 // pred_region
          %p420 = scmp.lt.s32.totalorder %s26, 2
          %s421 = scalar_select %p420, %s26, 2
          %p422 = scmp.lt.s32.totalorder %s25, 0
          %s423 = scalar_select %p422, %s25, 0
          %s424 = sadd.s32 %s423, %s421
          %s425 = smul.addr %s424, 8
          %s426 = scalar_lea.vmem %s1, %s425
        $region52: #{tpu_custom_call.1} parent=43 // pred_fallthru
          _
      $region44: #{tpu_custom_call.1} parent=5 // pred_fallthru
        _
      %p427 = scmp.le.s32.totalorder 1, %s18
      %p428 = scmp.lt.s32.totalorder %s18, 4
      %p429 = pnand %p427, %p428
      %p430 = pneg %p429
      // Predicated region
      $region53: #{tpu_custom_call.1} parent=5 // pred_check
        _
      $region54: #{tpu_custom_call.1} parent=5 // pred_check_branch
        %432 = sbr.rel (%p429) target = $region56
      $region55: #{tpu_custom_call.1} parent=5 // pred_region
        %s433 = ssub.s32 %s18, 1
        // Predicated region
        $region57: #{tpu_custom_call.1} parent=55 // pred_check
          %p434 = pneg %p188
        $region58: #{tpu_custom_call.1} parent=55 // pred_check_branch
          %436 = sbr.rel (%p434) target = $region60
        $region59: #{tpu_custom_call.1} parent=55 // pred_region
          %437 = dma.done [#allocation3], 4096
        $region60: #{tpu_custom_call.1} parent=55 // pred_fallthru
          _
        %p438 = scmp.lt.s32.totalorder %s28, 2
        %s439 = scalar_select %p438, %s28, 2
        %s440 = smul.addr %s439, 8
        %s441 = scalar_lea.vmem %s0, %s440
        %p442 = pneg %p56
        %p443 = pneg %p53
        %p444 = scmp.lt.s32.totalorder %s28, 2
        %s445 = scalar_select %p444, %s28, 2
        %p446 = scmp.lt.s32.totalorder %s27, 0
        %s447 = scalar_select %p446, %s27, 0
        %s448 = sadd.s32 %s447, %s445
        %s449 = smul.addr %s448, 8
        %s450 = scalar_lea.vmem %s1, %s449
        %p451 = pneg %p84
        %p452 = pneg %p81
        %s453 = smul.u32 4, %s27
        %p454 = scmp.lt.s32.totalorder %s453, 3
        %s455 = scalar_select %p454, %s453, 3
        %s456 = smul.addr %s455, 8
        %s457 = scalar_lea.vmem %s2, %s456
        %p458 = pneg %p110
        %p459 = pneg %p107
        %s460 = smul.u32 4, %s27
        %p461 = scmp.lt.s32.totalorder %s460, 3
        %s462 = scalar_select %p461, %s460, 3
        %s463 = scalar_lea.vmem %s3, %s462
        %p464 = pneg %p136
        %p465 = pneg %p133
        %s466 = smul.u32 4, %s27
        %p467 = scmp.lt.s32.totalorder %s466, 3
        %s468 = scalar_select %p467, %s466, 3
        %s469 = scalar_lea.vmem %s4, %s468
        %p470 = pneg %p162
        %p471 = pneg %p159
        %p472 = pneg %p188
        %p473 = pneg %p185
        %s474 = smul.u32 4, %s27
        %p475 = scmp.lt.s32.totalorder %s474, 3
        %s476 = scalar_select %p475, %s474, 3
        %s477 = smul.addr %s476, 2
        %s478 = scalar_lea.vmem %s6, %s477
        %p479 = pneg %p214
        %p480 = pneg %p211
        %s481 = smul.u32 4, %s27
        %p482 = scmp.lt.s32.totalorder %s481, 3
        %s483 = scalar_select %p482, %s481, 3
        %s484 = smul.addr %s483, 4
        %s485 = smul.addr %s484, 8
        %s486 = scalar_lea.vmem %s7, %s485
        %p487 = pneg %p240
        %p488 = pneg %p237
        %s489 = smul.u32 4, %s27
        %p490 = scmp.lt.s32.totalorder %s489, 3
        %s491 = scalar_select %p490, %s489, 3
        %s492 = scalar_lea.vmem %s8, %s491
        %p493 = pneg %p266
        %p494 = pneg %p263
        %p495 = pneg %p294
        %p496 = pneg %p291
        %p497 = scmp.lt.s32.totalorder %s28, 2
        %s498 = scalar_select %p497, %s28, 2
        %p499 = scmp.lt.s32.totalorder %s27, 0
        %s500 = scalar_select %p499, %s27, 0
        %s501 = sadd.s32 %s500, %s498
        %s502 = smul.addr %s501, 8
        %s503 = scalar_lea.vmem %s9, %s502
        %p504 = pneg %p322
        %p505 = pneg %p319
        %p506 = scmp.lt.s32.totalorder %s28, 2
        %s507 = scalar_select %p506, %s28, 2
        %p508 = scmp.lt.s32.totalorder %s27, 0
        %s509 = scalar_select %p508, %s27, 0
        %s510 = sadd.s32 %s509, %s507
        %s511 = smul.addr %s510, 8
        %s512 = scalar_lea.vmem %s10, %s511
        %p513 = scmp.lt.s32.totalorder %s28, 2
        %s514 = scalar_select %p513, %s28, 2
        %s515 = smul.addr %s514, 8
        %s516 = scalar_lea.vmem %s0, %s515
        %p517 = scmp.lt.s32.totalorder %s28, 2
        %s518 = scalar_select %p517, %s28, 2
        %p519 = scmp.lt.s32.totalorder %s27, 0
        %s520 = scalar_select %p519, %s27, 0
        %s521 = sadd.s32 %s520, %s518
        %s522 = smul.addr %s521, 8
        %s523 = scalar_lea.vmem %s1, %s522
        %s524 = smul.u32 4, %s27
        %p525 = scmp.lt.s32.totalorder %s524, 3
        %s526 = scalar_select %p525, %s524, 3
        %s527 = smul.addr %s526, 8
        %s528 = scalar_lea.vmem %s2, %s527
        %s529 = smul.u32 4, %s27
        %s530 = smul.u32 4, %s27
        %p531 = scmp.lt.s32.totalorder %s530, 3
        %s532 = scalar_select %p531, %s530, 3
        %s533 = scalar_lea.vmem %s3, %s532
        %s534 = smul.u32 4, %s27
        %s535 = smul.u32 4, %s27
        %p536 = scmp.lt.s32.totalorder %s535, 3
        %s537 = scalar_select %p536, %s535, 3
        %s538 = scalar_lea.vmem %s4, %s537
        %s539 = smul.u32 4, %s27
        %s540 = smul.u32 4, %s27
        %s541 = smul.u32 4, %s27
        %p542 = scmp.lt.s32.totalorder %s541, 3
        %s543 = scalar_select %p542, %s541, 3
        %s544 = smul.addr %s543, 2
        %s545 = scalar_lea.vmem %s6, %s544
        %s546 = smul.u32 4, %s27
        %s547 = smul.u32 4, %s27
        %p548 = scmp.lt.s32.totalorder %s547, 3
        %s549 = scalar_select %p548, %s547, 3
        %s550 = smul.addr %s549, 4
        %s551 = smul.addr %s550, 8
        %s552 = scalar_lea.vmem %s7, %s551
        %s553 = smul.u32 4, %s27
        %s554 = smul.u32 4, %s27
        %p555 = scmp.lt.s32.totalorder %s554, 3
        %s556 = scalar_select %p555, %s554, 3
        %s557 = scalar_lea.vmem %s8, %s556
        %s558 = smul.u32 4, %s27
        %p559 = scmp.lt.s32.totalorder %s28, 2
        %s560 = scalar_select %p559, %s28, 2
        %p561 = scmp.lt.s32.totalorder %s27, 0
        %s562 = scalar_select %p561, %s27, 0
        %s563 = sadd.s32 %s562, %s560
        %s564 = smul.addr %s563, 8
        %s565 = scalar_lea.vmem %s9, %s564
        %p566 = scmp.lt.s32.totalorder %s28, 2
        %s567 = scalar_select %p566, %s28, 2
        %p568 = scmp.lt.s32.totalorder %s27, 0
        %s569 = scalar_select %p568, %s27, 0
        %s570 = sadd.s32 %s569, %s567
        %s571 = smul.addr %s570, 8
        %s572 = scalar_lea.vmem %s10, %s571
        %v573 = vld [vmem:[%s516] sm:$0xff]
        %v574 = vld [vmem:[%s523] sm:$0xff]
        %v575 = vld [vmem:[%s528] sm:$0xff]
        %v576 = vld [vmem:[%s533] sm:$0x1]
        %v577 = vld [vmem:[%s538] sm:$0x1]
        %579 = vset.pattern.permute.xlu0 0
        %580 = vperm.xlu0 %579, %v574
        %v581 = vpop.permute.xlu0 %580
        %v584 = vlaneseq
        %v585 = vshrl.u32 %v584, 7
        %v586 = vsub.s32 0, %v585
        %v587 = vrot.slane %v576, %v586
        %v589 = vmul.f32 %v581, %v587
        %vm590 = vcmask 64512
        %v592 = vsel %vm590, %v573, 0
        %594 = vmatprep.subr.mxu0 0.0
        %595 = vmatpush1.msra.mxu0 %v575
        %596 = vmatprep.subr.mxu0 0.0
        %597 = vmatpush1.msra.mxu0 0.0
        %598 = vmatprep.subr.mxu0 0.0
        %599 = vmatpush1.msra.mxu0 0.0
        %600 = vmatprep.subr.mxu0 0.0
        %601 = vmatpush1.msra.mxu0 0.0
        %602 = vmatprep.subr.mxu0 0.0
        %603 = vmatpush1.msra.mxu0 0.0
        %604 = vmatprep.subr.mxu0 0.0
        %605 = vmatpush1.msra.mxu0 0.0
        %606 = vmatprep.subr.mxu0 0.0
        %607 = vmatpush1.msra.mxu0 0.0
        %608 = vmatprep.subr.mxu0 0.0
        %609 = vmatpush1.msra.mxu0 0.0
        %610 = vmatprep.subr.mxu0 0.0
        %611 = vmatpush1.msra.mxu0 0.0
        %612 = vmatprep.subr.mxu0 0.0
        %613 = vmatpush1.msra.mxu0 0.0
        %614 = vmatprep.subr.mxu0 0.0
        %615 = vmatpush1.msra.mxu0 0.0
        %616 = vmatprep.subr.mxu0 0.0
        %617 = vmatpush1.msra.mxu0 0.0
        %618 = vmatprep.subr.mxu0 0.0
        %619 = vmatpush1.msra.mxu0 0.0
        %620 = vmatprep.subr.mxu0 0.0
        %621 = vmatpush1.msra.mxu0 0.0
        %622 = vmatprep.subr.mxu0 0.0
        %623 = vmatpush1.msra.mxu0 0.0
        %624 = vmatprep.subr.mxu0 0.0
        %625 = vmatpush1.msra.mxu0 0.0
        %626 = vmatprep.subr.mxu0 0.0
        %627 = vmatpush1.msra.mxu0 0.0
        %628 = vmatprep.subr.mxu0 0.0
        %629 = vmatpush1.msra.mxu0 0.0
        %630 = vmatprep.subr.mxu0 0.0
        %631 = vmatpush1.msra.mxu0 0.0
        %632 = vmatprep.subr.mxu0 0.0
        %633 = vmatpush1.msra.mxu0 0.0
        %634 = vmatprep.subr.mxu0 0.0
        %635 = vmatpush1.msra.mxu0 0.0
        %636 = vmatprep.subr.mxu0 0.0
        %637 = vmatpush1.msra.mxu0 0.0
        %638 = vmatprep.subr.mxu0 0.0
        %639 = vmatpush1.msra.mxu0 0.0
        %640 = vmatprep.subr.mxu0 0.0
        %641 = vmatpush1.msra.mxu0 0.0
        %642 = vmatprep.subr.mxu0 0.0
        %643 = vmatpush1.msra.mxu0 0.0
        %644 = vmatprep.subr.mxu0 0.0
        %645 = vmatpush1.msra.mxu0 0.0
        %646 = vmatprep.subr.mxu0 0.0
        %647 = vmatpush1.msra.mxu0 0.0
        %648 = vmatprep.subr.mxu0 0.0
        %649 = vmatpush1.msra.mxu0 0.0
        %650 = vmatprep.subr.mxu0 0.0
        %651 = vmatpush1.msra.mxu0 0.0
        %652 = vmatprep.subr.mxu0 0.0
        %653 = vmatpush1.msra.mxu0 0.0
        %654 = vmatprep.subr.mxu0 0.0
        %655 = vmatpush1.msra.mxu0 0.0
        %656 = vmatprep.subr.mxu0 0.0
        %657 = vmatpush1.msra.mxu0 0.0
        %658 = vmatprep.mubr.f32.mxu0 0.0
        %659 = vmatmul.mubr.f32.gmra.mrb[0].mxu0 %v592
        %v660 = vpop.f32.mrb[0].mxu0
        %v661 = vadd.f32 %v589, %v660
        %v662 = vpop.f32.mrb[0].mxu0
        %663 = vdwg.mxu0
        %v665 = vlaneseq
        %v666 = vshrl.u32 %v665, 7
        %v667 = vsub.s32 0, %v666
        %v668 = vrot.slane %v577, %v667
        %v670 = vadd.f32 %v661, %v668
        %vm671 = vcmp.gt.f32.partialorder %v670, 0.0
        %v672 = vmul.f32 %v670, 0.2
        %v673 = vsel %vm671, %v670, %v672
        %v674 = vmul.f32 %v576, 0.2
        %v676 = vlaneseq
        %v677 = vshrl.u32 %v676, 7
        %v678 = vsub.s32 0, %v677
        %v679 = vrot.slane %v674, %v678
        %v681 = vsel %vm671, %v587, %v679
        %v682 = vld [vmem:[#allocation2] sm:$0xff]
        %v683 = vld [vmem:[#allocation2 + $0x8] sm:$0xff]
        %v684 = vld [vmem:[#allocation2 + $0x10] sm:$0xff]
        %v685 = vld [vmem:[#allocation2 + $0x18] sm:$0xff]
        %v686 = vld [vmem:[%s545] sm:$0x1]
        %vm687 = vcmask 261120
        %v689 = vsel %vm687, %v673, 0
        %v692 = vsel %vm687, %v681, 0
        %694 = vmatprep.subr.mxu0 0.0
        %695 = vmatpush1.msra.mxu0 %v682
        %696 = vmatprep.subr.mxu0 0.0
        %697 = vmatpush1.msra.mxu0 %v683
        %698 = vmatprep.subr.mxu0 0.0
        %699 = vmatpush1.msra.mxu0 %v684
        %700 = vmatprep.subr.mxu0 0.0
        %701 = vmatpush1.msra.mxu0 %v685
        %702 = vmatprep.subr.mxu0 0.0
        %703 = vmatpush1.msra.mxu0 0.0
        %704 = vmatprep.subr.mxu0 0.0
        %705 = vmatpush1.msra.mxu0 0.0
        %706 = vmatprep.subr.mxu0 0.0
        %707 = vmatpush1.msra.mxu0 0.0
        %708 = vmatprep.subr.mxu0 0.0
        %709 = vmatpush1.msra.mxu0 0.0
        %710 = vmatprep.subr.mxu0 0.0
        %711 = vmatpush1.msra.mxu0 0.0
        %712 = vmatprep.subr.mxu0 0.0
        %713 = vmatpush1.msra.mxu0 0.0
        %714 = vmatprep.subr.mxu0 0.0
        %715 = vmatpush1.msra.mxu0 0.0
        %716 = vmatprep.subr.mxu0 0.0
        %717 = vmatpush1.msra.mxu0 0.0
        %718 = vmatprep.subr.mxu0 0.0
        %719 = vmatpush1.msra.mxu0 0.0
        %720 = vmatprep.subr.mxu0 0.0
        %721 = vmatpush1.msra.mxu0 0.0
        %722 = vmatprep.subr.mxu0 0.0
        %723 = vmatpush1.msra.mxu0 0.0
        %724 = vmatprep.subr.mxu0 0.0
        %725 = vmatpush1.msra.mxu0 0.0
        %726 = vmatprep.subr.mxu0 0.0
        %727 = vmatpush1.msra.mxu0 0.0
        %728 = vmatprep.subr.mxu0 0.0
        %729 = vmatpush1.msra.mxu0 0.0
        %730 = vmatprep.subr.mxu0 0.0
        %731 = vmatpush1.msra.mxu0 0.0
        %732 = vmatprep.subr.mxu0 0.0
        %733 = vmatpush1.msra.mxu0 0.0
        %734 = vmatprep.subr.mxu0 0.0
        %735 = vmatpush1.msra.mxu0 0.0
        %736 = vmatprep.subr.mxu0 0.0
        %737 = vmatpush1.msra.mxu0 0.0
        %738 = vmatprep.subr.mxu0 0.0
        %739 = vmatpush1.msra.mxu0 0.0
        %740 = vmatprep.subr.mxu0 0.0
        %741 = vmatpush1.msra.mxu0 0.0
        %742 = vmatprep.subr.mxu0 0.0
        %743 = vmatpush1.msra.mxu0 0.0
        %744 = vmatprep.subr.mxu0 0.0
        %745 = vmatpush1.msra.mxu0 0.0
        %746 = vmatprep.subr.mxu0 0.0
        %747 = vmatpush1.msra.mxu0 0.0
        %748 = vmatprep.subr.mxu0 0.0
        %749 = vmatpush1.msra.mxu0 0.0
        %750 = vmatprep.subr.mxu0 0.0
        %751 = vmatpush1.msra.mxu0 0.0
        %752 = vmatprep.subr.mxu0 0.0
        %753 = vmatpush1.msra.mxu0 0.0
        %754 = vmatprep.subr.mxu0 0.0
        %755 = vmatpush1.msra.mxu0 0.0
        %756 = vmatprep.subr.mxu0 0.0
        %757 = vmatpush1.msra.mxu0 0.0
        %758 = vmatprep.mubr.f32.mxu0 0.0
        %759 = vmatmul.mubr.f32.gmra.mrb[0].mxu0 %v689
        %v760 = vpop.f32.mrb[0].mxu0
        %v761 = vadd.f32 0.0, %v760
        %v762 = vpop.f32.mrb[0].mxu0
        %763 = vmatprep.mubr.f32.mxu0 0.0
        %764 = vmatmul.mubr.f32.gmra.mrb[0].mxu0 %v692
        %v765 = vpop.f32.mrb[0].mxu0
        %v766 = vadd.f32 0.0, %v765
        %v767 = vpop.f32.mrb[0].mxu0
        %768 = vdwg.mxu0
        %v770 = vlaneseq
        %v771 = vshrl.u32 %v770, 7
        %v772 = vsub.s32 0, %v771
        %v773 = vrot.slane %v686, %v772
        %v775 = vadd.f32 %v761, %v773
        %vm776 = vcmp.gt.f32.partialorder %v775, 0.0
        %v777 = vmul.f32 %v775, 0.2
        %v778 = vsel %vm776, %v775, %v777
        %v779 = vmul.f32 %v766, 0.2
        %v780 = vsel %vm776, %v766, %v779
        %s781 = scalar_lea.vmem [#allocation2], 32
        %v782 = vld [vmem:[%s781] sm:$0xff]
        %v783 = vld [vmem:[%s781 + $0x8] sm:$0xff]
        %v784 = vld [vmem:[%s781 + $0x10] sm:$0xff]
        %v785 = vld [vmem:[%s781 + $0x18] sm:$0xff]
        %s786 = scalar_lea.vmem %s545, 1
        %v787 = vld [vmem:[%s786] sm:$0x1]
        %v789 = vsel %vm687, %v778, 0
        %v792 = vsel %vm687, %v780, 0
        %794 = vmatprep.subr.mxu0 0.0
        %795 = vmatpush1.msra.mxu0 %v782
        %796 = vmatprep.subr.mxu0 0.0
        %797 = vmatpush1.msra.mxu0 %v783
        %798 = vmatprep.subr.mxu0 0.0
        %799 = vmatpush1.msra.mxu0 %v784
        %800 = vmatprep.subr.mxu0 0.0
        %801 = vmatpush1.msra.mxu0 %v785
        %802 = vmatprep.subr.mxu0 0.0
        %803 = vmatpush1.msra.mxu0 0.0
        %804 = vmatprep.subr.mxu0 0.0
        %805 = vmatpush1.msra.mxu0 0.0
        %806 = vmatprep.subr.mxu0 0.0
        %807 = vmatpush1.msra.mxu0 0.0
        %808 = vmatprep.subr.mxu0 0.0
        %809 = vmatpush1.msra.mxu0 0.0
        %810 = vmatprep.subr.mxu0 0.0
        %811 = vmatpush1.msra.mxu0 0.0
        %812 = vmatprep.subr.mxu0 0.0
        %813 = vmatpush1.msra.mxu0 0.0
        %814 = vmatprep.subr.mxu0 0.0
        %815 = vmatpush1.msra.mxu0 0.0
        %816 = vmatprep.subr.mxu0 0.0
        %817 = vmatpush1.msra.mxu0 0.0
        %818 = vmatprep.subr.mxu0 0.0
        %819 = vmatpush1.msra.mxu0 0.0
        %820 = vmatprep.subr.mxu0 0.0
        %821 = vmatpush1.msra.mxu0 0.0
        %822 = vmatprep.subr.mxu0 0.0
        %823 = vmatpush1.msra.mxu0 0.0
        %824 = vmatprep.subr.mxu0 0.0
        %825 = vmatpush1.msra.mxu0 0.0
        %826 = vmatprep.subr.mxu0 0.0
        %827 = vmatpush1.msra.mxu0 0.0
        %828 = vmatprep.subr.mxu0 0.0
        %829 = vmatpush1.msra.mxu0 0.0
        %830 = vmatprep.subr.mxu0 0.0
        %831 = vmatpush1.msra.mxu0 0.0
        %832 = vmatprep.subr.mxu0 0.0
        %833 = vmatpush1.msra.mxu0 0.0
        %834 = vmatprep.subr.mxu0 0.0
        %835 = vmatpush1.msra.mxu0 0.0
        %836 = vmatprep.subr.mxu0 0.0
        %837 = vmatpush1.msra.mxu0 0.0
        %838 = vmatprep.subr.mxu0 0.0
        %839 = vmatpush1.msra.mxu0 0.0
        %840 = vmatprep.subr.mxu0 0.0
        %841 = vmatpush1.msra.mxu0 0.0
        %842 = vmatprep.subr.mxu0 0.0
        %843 = vmatpush1.msra.mxu0 0.0
        %844 = vmatprep.subr.mxu0 0.0
        %845 = vmatpush1.msra.mxu0 0.0
        %846 = vmatprep.subr.mxu0 0.0
        %847 = vmatpush1.msra.mxu0 0.0
        %848 = vmatprep.subr.mxu0 0.0
        %849 = vmatpush1.msra.mxu0 0.0
        %850 = vmatprep.subr.mxu0 0.0
        %851 = vmatpush1.msra.mxu0 0.0
        %852 = vmatprep.subr.mxu0 0.0
        %853 = vmatpush1.msra.mxu0 0.0
        %854 = vmatprep.subr.mxu0 0.0
        %855 = vmatpush1.msra.mxu0 0.0
        %856 = vmatprep.subr.mxu0 0.0
        %857 = vmatpush1.msra.mxu0 0.0
        %858 = vmatprep.mubr.f32.mxu0 0.0
        %859 = vmatmul.mubr.f32.gmra.mrb[0].mxu0 %v789
        %v860 = vpop.f32.mrb[0].mxu0
        %v861 = vadd.f32 0.0, %v860
        %v862 = vpop.f32.mrb[0].mxu0
        %863 = vmatprep.mubr.f32.mxu0 0.0
        %864 = vmatmul.mubr.f32.gmra.mrb[0].mxu0 %v792
        %v865 = vpop.f32.mrb[0].mxu0
        %v866 = vadd.f32 0.0, %v865
        %v867 = vpop.f32.mrb[0].mxu0
        %868 = vdwg.mxu0
        %v870 = vlaneseq
        %v871 = vshrl.u32 %v870, 7
        %v872 = vsub.s32 0, %v871
        %v873 = vrot.slane %v787, %v872
        %v875 = vadd.f32 %v861, %v873
        %vm876 = vcmp.gt.f32.partialorder %v875, 0.0
        %v877 = vmul.f32 %v875, 0.2
        %v878 = vsel %vm876, %v875, %v877
        %v879 = vmul.f32 %v866, 0.2
        %v880 = vsel %vm876, %v866, %v879
        %v881 = vld [vmem:[%s552] sm:$0xff]
        %v882 = vld [vmem:[%s552 + $0x8] sm:$0xff]
        %v883 = vld [vmem:[%s552 + $0x10] sm:$0xff]
        %v884 = vld [vmem:[%s552 + $0x18] sm:$0xff]
        %v886 = vsel %vm687, %v878, 0
        %v889 = vsel %vm687, %v880, 0
        %891 = vmatprep.subr.mxu0 0.0
        %892 = vmatpush1.msra.mxu0 %v881
        %893 = vmatprep.subr.mxu0 0.0
        %894 = vmatpush1.msra.mxu0 %v882
        %895 = vmatprep.subr.mxu0 0.0
        %896 = vmatpush1.msra.mxu0 %v883
        %897 = vmatprep.subr.mxu0 0.0
        %898 = vmatpush1.msra.mxu0 %v884
        %899 = vmatprep.subr.mxu0 0.0
        %900 = vmatpush1.msra.mxu0 0.0
        %901 = vmatprep.subr.mxu0 0.0
        %902 = vmatpush1.msra.mxu0 0.0
        %903 = vmatprep.subr.mxu0 0.0
        %904 = vmatpush1.msra.mxu0 0.0
        %905 = vmatprep.subr.mxu0 0.0
        %906 = vmatpush1.msra.mxu0 0.0
        %907 = vmatprep.subr.mxu0 0.0
        %908 = vmatpush1.msra.mxu0 0.0
        %909 = vmatprep.subr.mxu0 0.0
        %910 = vmatpush1.msra.mxu0 0.0
        %911 = vmatprep.subr.mxu0 0.0
        %912 = vmatpush1.msra.mxu0 0.0
        %913 = vmatprep.subr.mxu0 0.0
        %914 = vmatpush1.msra.mxu0 0.0
        %915 = vmatprep.subr.mxu0 0.0
        %916 = vmatpush1.msra.mxu0 0.0
        %917 = vmatprep.subr.mxu0 0.0
        %918 = vmatpush1.msra.mxu0 0.0
        %919 = vmatprep.subr.mxu0 0.0
        %920 = vmatpush1.msra.mxu0 0.0
        %921 = vmatprep.subr.mxu0 0.0
        %922 = vmatpush1.msra.mxu0 0.0
        %923 = vmatprep.subr.mxu0 0.0
        %924 = vmatpush1.msra.mxu0 0.0
        %925 = vmatprep.subr.mxu0 0.0
        %926 = vmatpush1.msra.mxu0 0.0
        %927 = vmatprep.subr.mxu0 0.0
        %928 = vmatpush1.msra.mxu0 0.0
        %929 = vmatprep.subr.mxu0 0.0
        %930 = vmatpush1.msra.mxu0 0.0
        %931 = vmatprep.subr.mxu0 0.0
        %932 = vmatpush1.msra.mxu0 0.0
        %933 = vmatprep.subr.mxu0 0.0
        %934 = vmatpush1.msra.mxu0 0.0
        %935 = vmatprep.subr.mxu0 0.0
        %936 = vmatpush1.msra.mxu0 0.0
        %937 = vmatprep.subr.mxu0 0.0
        %938 = vmatpush1.msra.mxu0 0.0
        %939 = vmatprep.subr.mxu0 0.0
        %940 = vmatpush1.msra.mxu0 0.0
        %941 = vmatprep.subr.mxu0 0.0
        %942 = vmatpush1.msra.mxu0 0.0
        %943 = vmatprep.subr.mxu0 0.0
        %944 = vmatpush1.msra.mxu0 0.0
        %945 = vmatprep.subr.mxu0 0.0
        %946 = vmatpush1.msra.mxu0 0.0
        %947 = vmatprep.subr.mxu0 0.0
        %948 = vmatpush1.msra.mxu0 0.0
        %949 = vmatprep.subr.mxu0 0.0
        %950 = vmatpush1.msra.mxu0 0.0
        %951 = vmatprep.subr.mxu0 0.0
        %952 = vmatpush1.msra.mxu0 0.0
        %953 = vmatprep.subr.mxu0 0.0
        %954 = vmatpush1.msra.mxu0 0.0
        %955 = vmatprep.mubr.f32.mxu0 0.0
        %956 = vmatmul.mubr.f32.gmra.mrb[0].mxu0 %v886
        %v957 = vpop.f32.mrb[0].mxu0
        %v958 = vadd.f32 0.0, %v957
        %v959 = vpop.f32.mrb[0].mxu0
        %960 = vmatprep.mubr.f32.mxu0 0.0
        %961 = vmatmul.mubr.f32.gmra.mrb[0].mxu0 %v889
        %v962 = vpop.f32.mrb[0].mxu0
        %v963 = vadd.f32 0.0, %v962
        %v964 = vpop.f32.mrb[0].mxu0
        %965 = vdwg.mxu0
        %v966 = vld [vmem:[%s557] sm:$0x1]
        %v968 = vlaneseq
        %v969 = vshrl.u32 %v968, 7
        %v970 = vsub.s32 0, %v969
        %v971 = vrot.slane %v966, %v970
        %v973 = vadd.f32 %v958, %v971
        %v974 = vand.u32 2147483647, %v963
        %v975 = vlog2.pop %v974
        %v976 = vmul.f32 %v975, 0.6931472
        %s977 = scalar_lea.vmem %s528, 8
        %v978 = vld [vmem:[%s977] sm:$0xff]
        %s979 = scalar_lea.vmem %s533, 1
        %v980 = vld [vmem:[%s979] sm:$0x1]
        %s981 = scalar_lea.vmem %s538, 1
        %v982 = vld [vmem:[%s981] sm:$0x1]
        %983 = vset.pattern.permute.xlu0 1
        %984 = vperm.xlu0 %983, %v574
        %v985 = vpop.permute.xlu0 %984
        %v988 = vlaneseq
        %v989 = vshrl.u32 %v988, 7
        %v990 = vsub.s32 0, %v989
        %v991 = vrot.slane %v980, %v990
        %v993 = vmul.f32 %v985, %v991
        %994 = vmatprep.subr.mxu0 0.0
        %995 = vmatpush1.msra.mxu0 %v978
        %996 = vmatprep.subr.mxu0 0.0
        %997 = vmatpush1.msra.mxu0 0.0
        %998 = vmatprep.subr.mxu0 0.0
        %999 = vmatpush1.msra.mxu0 0.0
        %1000 = vmatprep.subr.mxu0 0.0
        %1001 = vmatpush1.msra.mxu0 0.0
        %1002 = vmatprep.subr.mxu0 0.0
        %1003 = vmatpush1.msra.mxu0 0.0
        %1004 = vmatprep.subr.mxu0 0.0
        %1005 = vmatpush1.msra.mxu0 0.0
        %1006 = vmatprep.subr.mxu0 0.0
        %1007 = vmatpush1.msra.mxu0 0.0
        %1008 = vmatprep.subr.mxu0 0.0
        %1009 = vmatpush1.msra.mxu0 0.0
        %1010 = vmatprep.subr.mxu0 0.0
        %1011 = vmatpush1.msra.mxu0 0.0
        %1012 = vmatprep.subr.mxu0 0.0
        %1013 = vmatpush1.msra.mxu0 0.0
        %1014 = vmatprep.subr.mxu0 0.0
        %1015 = vmatpush1.msra.mxu0 0.0
        %1016 = vmatprep.subr.mxu0 0.0
        %1017 = vmatpush1.msra.mxu0 0.0
        %1018 = vmatprep.subr.mxu0 0.0
        %1019 = vmatpush1.msra.mxu0 0.0
        %1020 = vmatprep.subr.mxu0 0.0
        %1021 = vmatpush1.msra.mxu0 0.0
        %1022 = vmatprep.subr.mxu0 0.0
        %1023 = vmatpush1.msra.mxu0 0.0
        %1024 = vmatprep.subr.mxu0 0.0
        %1025 = vmatpush1.msra.mxu0 0.0
        %1026 = vmatprep.subr.mxu0 0.0
        %1027 = vmatpush1.msra.mxu0 0.0
        %1028 = vmatprep.subr.mxu0 0.0
        %1029 = vmatpush1.msra.mxu0 0.0
        %1030 = vmatprep.subr.mxu0 0.0
        %1031 = vmatpush1.msra.mxu0 0.0
        %1032 = vmatprep.subr.mxu0 0.0
        %1033 = vmatpush1.msra.mxu0 0.0
        %1034 = vmatprep.subr.mxu0 0.0
        %1035 = vmatpush1.msra.mxu0 0.0
        %1036 = vmatprep.subr.mxu0 0.0
        %1037 = vmatpush1.msra.mxu0 0.0
        %1038 = vmatprep.subr.mxu0 0.0
        %1039 = vmatpush1.msra.mxu0 0.0
        %1040 = vmatprep.subr.mxu0 0.0
        %1041 = vmatpush1.msra.mxu0 0.0
        %1042 = vmatprep.subr.mxu0 0.0
        %1043 = vmatpush1.msra.mxu0 0.0
        %1044 = vmatprep.subr.mxu0 0.0
        %1045 = vmatpush1.msra.mxu0 0.0
        %1046 = vmatprep.subr.mxu0 0.0
        %1047 = vmatpush1.msra.mxu0 0.0
        %1048 = vmatprep.subr.mxu0 0.0
        %1049 = vmatpush1.msra.mxu0 0.0
        %1050 = vmatprep.subr.mxu0 0.0
        %1051 = vmatpush1.msra.mxu0 0.0
        %1052 = vmatprep.subr.mxu0 0.0
        %1053 = vmatpush1.msra.mxu0 0.0
        %1054 = vmatprep.subr.mxu0 0.0
        %1055 = vmatpush1.msra.mxu0 0.0
        %1056 = vmatprep.subr.mxu0 0.0
        %1057 = vmatpush1.msra.mxu0 0.0
        %1058 = vmatprep.mubr.f32.mxu0 0.0
        %1059 = vmatmul.mubr.f32.gmra.mrb[0].mxu0 %v592
        %v1060 = vpop.f32.mrb[0].mxu0
        %v1061 = vadd.f32 %v993, %v1060
        %v1062 = vpop.f32.mrb[0].mxu0
        %1063 = vdwg.mxu0
        %v1065 = vlaneseq
        %v1066 = vshrl.u32 %v1065, 7
        %v1067 = vsub.s32 0, %v1066
        %v1068 = vrot.slane %v982, %v1067
        %v1070 = vadd.f32 %v1061, %v1068
        %vm1071 = vcmp.gt.f32.partialorder %v1070, 0.0
        %v1072 = vmul.f32 %v1070, 0.2
        %v1073 = vsel %vm1071, %v1070, %v1072
        %v1074 = vmul.f32 %v980, 0.2
        %v1076 = vlaneseq
        %v1077 = vshrl.u32 %v1076, 7
        %v1078 = vsub.s32 0, %v1077
        %v1079 = vrot.slane %v1074, %v1078
        %v1081 = vsel %vm1071, %v991, %v1079
        %s1082 = scalar_lea.vmem [#allocation2], 64
        %v1083 = vld [vmem:[%s1082] sm:$0xff]
        %v1084 = vld [vmem:[%s1082 + $0x8] sm:$0xff]
        %v1085 = vld [vmem:[%s1082 + $0x10] sm:$0xff]
        %v1086 = vld [vmem:[%s1082 + $0x18] sm:$0xff]
        %s1087 = scalar_lea.vmem %s545, 2
        %v1088 = vld [vmem:[%s1087] sm:$0x1]
        %v1090 = vsel %vm687, %v1073, 0
        %v1093 = vsel %vm687, %v1081, 0
        %1095 = vmatprep.subr.mxu0 0.0
        %1096 = vmatpush1.msra.mxu0 %v1083
        %1097 = vmatprep.subr.mxu0 0.0
        %1098 = vmatpush1.msra.mxu0 %v1084
        %1099 = vmatprep.subr.mxu0 0.0
        %1100 = vmatpush1.msra.mxu0 %v1085
        %1101 = vmatprep.subr.mxu0 0.0
        %1102 = vmatpush1.msra.mxu0 %v1086
        %1103 = vmatprep.subr.mxu0 0.0
        %1104 = vmatpush1.msra.mxu0 0.0
        %1105 = vmatprep.subr.mxu0 0.0
        %1106 = vmatpush1.msra.mxu0 0.0
        %1107 = vmatprep.subr.mxu0 0.0
        %1108 = vmatpush1.msra.mxu0 0.0
        %1109 = vmatprep.subr.mxu0 0.0
        %1110 = vmatpush1.msra.mxu0 0.0
        %1111 = vmatprep.subr.mxu0 0.0
        %1112 = vmatpush1.msra.mxu0 0.0
        %1113 = vmatprep.subr.mxu0 0.0
        %1114 = vmatpush1.msra.mxu0 0.0
        %1115 = vmatprep.subr.mxu0 0.0
        %1116 = vmatpush1.msra.mxu0 0.0
        %1117 = vmatprep.subr.mxu0 0.0
        %1118 = vmatpush1.msra.mxu0 0.0
        %1119 = vmatprep.subr.mxu0 0.0
        %1120 = vmatpush1.msra.mxu0 0.0
        %1121 = vmatprep.subr.mxu0 0.0
        %1122 = vmatpush1.msra.mxu0 0.0
        %1123 = vmatprep.subr.mxu0 0.0
        %1124 = vmatpush1.msra.mxu0 0.0
        %1125 = vmatprep.subr.mxu0 0.0
        %1126 = vmatpush1.msra.mxu0 0.0
        %1127 = vmatprep.subr.mxu0 0.0
        %1128 = vmatpush1.msra.mxu0 0.0
        %1129 = vmatprep.subr.mxu0 0.0
        %1130 = vmatpush1.msra.mxu0 0.0
        %1131 = vmatprep.subr.mxu0 0.0
        %1132 = vmatpush1.msra.mxu0 0.0
        %1133 = vmatprep.subr.mxu0 0.0
        %1134 = vmatpush1.msra.mxu0 0.0
        %1135 = vmatprep.subr.mxu0 0.0
        %1136 = vmatpush1.msra.mxu0 0.0
        %1137 = vmatprep.subr.mxu0 0.0
        %1138 = vmatpush1.msra.mxu0 0.0
        %1139 = vmatprep.subr.mxu0 0.0
        %1140 = vmatpush1.msra.mxu0 0.0
        %1141 = vmatprep.subr.mxu0 0.0
        %1142 = vmatpush1.msra.mxu0 0.0
        %1143 = vmatprep.subr.mxu0 0.0
        %1144 = vmatpush1.msra.mxu0 0.0
        %1145 = vmatprep.subr.mxu0 0.0
        %1146 = vmatpush1.msra.mxu0 0.0
        %1147 = vmatprep.subr.mxu0 0.0
        %1148 = vmatpush1.msra.mxu0 0.0
        %1149 = vmatprep.subr.mxu0 0.0
        %1150 = vmatpush1.msra.mxu0 0.0
        %1151 = vmatprep.subr.mxu0 0.0
        %1152 = vmatpush1.msra.mxu0 0.0
        %1153 = vmatprep.subr.mxu0 0.0
        %1154 = vmatpush1.msra.mxu0 0.0
        %1155 = vmatprep.subr.mxu0 0.0
        %1156 = vmatpush1.msra.mxu0 0.0
        %1157 = vmatprep.subr.mxu0 0.0
        %1158 = vmatpush1.msra.mxu0 0.0
        %1159 = vmatprep.mubr.f32.mxu0 0.0
        %1160 = vmatmul.mubr.f32.gmra.mrb[0].mxu0 %v1090
        %v1161 = vpop.f32.mrb[0].mxu0
        %v1162 = vadd.f32 0.0, %v1161
        %v1163 = vpop.f32.mrb[0].mxu0
        %1164 = vmatprep.mubr.f32.mxu0 0.0
        %1165 = vmatmul.mubr.f32.gmra.mrb[0].mxu0 %v1093
        %v1166 = vpop.f32.mrb[0].mxu0
        %v1167 = vadd.f32 0.0, %v1166
        %v1168 = vpop.f32.mrb[0].mxu0
        %1169 = vdwg.mxu0
        %v1171 = vlaneseq
        %v1172 = vshrl.u32 %v1171, 7
        %v1173 = vsub.s32 0, %v1172
        %v1174 = vrot.slane %v1088, %v1173
        %v1176 = vadd.f32 %v1162, %v1174
        %vm1177 = vcmp.gt.f32.partialorder %v1176, 0.0
        %v1178 = vmul.f32 %v1176, 0.2
        %v1179 = vsel %vm1177, %v1176, %v1178
        %v1180 = vmul.f32 %v1167, 0.2
        %v1181 = vsel %vm1177, %v1167, %v1180
        %s1182 = scalar_lea.vmem [#allocation2], 96
        %v1183 = vld [vmem:[%s1182] sm:$0xff]
        %v1184 = vld [vmem:[%s1182 + $0x8] sm:$0xff]
        %v1185 = vld [vmem:[%s1182 + $0x10] sm:$0xff]
        %v1186 = vld [vmem:[%s1182 + $0x18] sm:$0xff]
        %s1187 = scalar_lea.vmem %s545, 3
        %v1188 = vld [vmem:[%s1187] sm:$0x1]
        %v1190 = vsel %vm687, %v1179, 0
        %v1193 = vsel %vm687, %v1181, 0
        %1195 = vmatprep.subr.mxu0 0.0
        %1196 = vmatpush1.msra.mxu0 %v1183
        %1197 = vmatprep.subr.mxu0 0.0
        %1198 = vmatpush1.msra.mxu0 %v1184
        %1199 = vmatprep.subr.mxu0 0.0
        %1200 = vmatpush1.msra.mxu0 %v1185
        %1201 = vmatprep.subr.mxu0 0.0
        %1202 = vmatpush1.msra.mxu0 %v1186
        %1203 = vmatprep.subr.mxu0 0.0
        %1204 = vmatpush1.msra.mxu0 0.0
        %1205 = vmatprep.subr.mxu0 0.0
        %1206 = vmatpush1.msra.mxu0 0.0
        %1207 = vmatprep.subr.mxu0 0.0
        %1208 = vmatpush1.msra.mxu0 0.0
        %1209 = vmatprep.subr.mxu0 0.0
        %1210 = vmatpush1.msra.mxu0 0.0
        %1211 = vmatprep.subr.mxu0 0.0
        %1212 = vmatpush1.msra.mxu0 0.0
        %1213 = vmatprep.subr.mxu0 0.0
        %1214 = vmatpush1.msra.mxu0 0.0
        %1215 = vmatprep.subr.mxu0 0.0
        %1216 = vmatpush1.msra.mxu0 0.0
        %1217 = vmatprep.subr.mxu0 0.0
        %1218 = vmatpush1.msra.mxu0 0.0
        %1219 = vmatprep.subr.mxu0 0.0
        %1220 = vmatpush1.msra.mxu0 0.0
        %1221 = vmatprep.subr.mxu0 0.0
        %1222 = vmatpush1.msra.mxu0 0.0
        %1223 = vmatprep.subr.mxu0 0.0
        %1224 = vmatpush1.msra.mxu0 0.0
        %1225 = vmatprep.subr.mxu0 0.0
        %1226 = vmatpush1.msra.mxu0 0.0
        %1227 = vmatprep.subr.mxu0 0.0
        %1228 = vmatpush1.msra.mxu0 0.0
        %1229 = vmatprep.subr.mxu0 0.0
        %1230 = vmatpush1.msra.mxu0 0.0
        %1231 = vmatprep.subr.mxu0 0.0
        %1232 = vmatpush1.msra.mxu0 0.0
        %1233 = vmatprep.subr.mxu0 0.0
        %1234 = vmatpush1.msra.mxu0 0.0
        %1235 = vmatprep.subr.mxu0 0.0
        %1236 = vmatpush1.msra.mxu0 0.0
        %1237 = vmatprep.subr.mxu0 0.0
        %1238 = vmatpush1.msra.mxu0 0.0
        %1239 = vmatprep.subr.mxu0 0.0
        %1240 = vmatpush1.msra.mxu0 0.0
        %1241 = vmatprep.subr.mxu0 0.0
        %1242 = vmatpush1.msra.mxu0 0.0
        %1243 = vmatprep.subr.mxu0 0.0
        %1244 = vmatpush1.msra.mxu0 0.0
        %1245 = vmatprep.subr.mxu0 0.0
        %1246 = vmatpush1.msra.mxu0 0.0
        %1247 = vmatprep.subr.mxu0 0.0
        %1248 = vmatpush1.msra.mxu0 0.0
        %1249 = vmatprep.subr.mxu0 0.0
        %1250 = vmatpush1.msra.mxu0 0.0
        %1251 = vmatprep.subr.mxu0 0.0
        %1252 = vmatpush1.msra.mxu0 0.0
        %1253 = vmatprep.subr.mxu0 0.0
        %1254 = vmatpush1.msra.mxu0 0.0
        %1255 = vmatprep.subr.mxu0 0.0
        %1256 = vmatpush1.msra.mxu0 0.0
        %1257 = vmatprep.subr.mxu0 0.0
        %1258 = vmatpush1.msra.mxu0 0.0
        %1259 = vmatprep.mubr.f32.mxu0 0.0
        %1260 = vmatmul.mubr.f32.gmra.mrb[0].mxu0 %v1190
        %v1261 = vpop.f32.mrb[0].mxu0
        %v1262 = vadd.f32 0.0, %v1261
        %v1263 = vpop.f32.mrb[0].mxu0
        %1264 = vmatprep.mubr.f32.mxu0 0.0
        %1265 = vmatmul.mubr.f32.gmra.mrb[0].mxu0 %v1193
        %v1266 = vpop.f32.mrb[0].mxu0
        %v1267 = vadd.f32 0.0, %v1266
        %v1268 = vpop.f32.mrb[0].mxu0
        %1269 = vdwg.mxu0
        %v1271 = vlaneseq
        %v1272 = vshrl.u32 %v1271, 7
        %v1273 = vsub.s32 0, %v1272
        %v1274 = vrot.slane %v1188, %v1273
        %v1276 = vadd.f32 %v1262, %v1274
        %vm1277 = vcmp.gt.f32.partialorder %v1276, 0.0
        %v1278 = vmul.f32 %v1276, 0.2
        %v1279 = vsel %vm1277, %v1276, %v1278
        %v1280 = vmul.f32 %v1267, 0.2
        %v1281 = vsel %vm1277, %v1267, %v1280
        %s1282 = scalar_lea.vmem %s552, 32
        %v1283 = vld [vmem:[%s1282] sm:$0xff]
        %v1284 = vld [vmem:[%s1282 + $0x8] sm:$0xff]
        %v1285 = vld [vmem:[%s1282 + $0x10] sm:$0xff]
        %v1286 = vld [vmem:[%s1282 + $0x18] sm:$0xff]
        %v1288 = vsel %vm687, %v1279, 0
        %v1291 = vsel %vm687, %v1281, 0
        %1293 = vmatprep.subr.mxu0 0.0
        %1294 = vmatpush1.msra.mxu0 %v1283
        %1295 = vmatprep.subr.mxu0 0.0
        %1296 = vmatpush1.msra.mxu0 %v1284
        %1297 = vmatprep.subr.mxu0 0.0
        %1298 = vmatpush1.msra.mxu0 %v1285
        %1299 = vmatprep.subr.mxu0 0.0
        %1300 = vmatpush1.msra.mxu0 %v1286
        %1301 = vmatprep.subr.mxu0 0.0
        %1302 = vmatpush1.msra.mxu0 0.0
        %1303 = vmatprep.subr.mxu0 0.0
        %1304 = vmatpush1.msra.mxu0 0.0
        %1305 = vmatprep.subr.mxu0 0.0
        %1306 = vmatpush1.msra.mxu0 0.0
        %1307 = vmatprep.subr.mxu0 0.0
        %1308 = vmatpush1.msra.mxu0 0.0
        %1309 = vmatprep.subr.mxu0 0.0
        %1310 = vmatpush1.msra.mxu0 0.0
        %1311 = vmatprep.subr.mxu0 0.0
        %1312 = vmatpush1.msra.mxu0 0.0
        %1313 = vmatprep.subr.mxu0 0.0
        %1314 = vmatpush1.msra.mxu0 0.0
        %1315 = vmatprep.subr.mxu0 0.0
        %1316 = vmatpush1.msra.mxu0 0.0
        %1317 = vmatprep.subr.mxu0 0.0
        %1318 = vmatpush1.msra.mxu0 0.0
        %1319 = vmatprep.subr.mxu0 0.0
        %1320 = vmatpush1.msra.mxu0 0.0
        %1321 = vmatprep.subr.mxu0 0.0
        %1322 = vmatpush1.msra.mxu0 0.0
        %1323 = vmatprep.subr.mxu0 0.0
        %1324 = vmatpush1.msra.mxu0 0.0
        %1325 = vmatprep.subr.mxu0 0.0
        %1326 = vmatpush1.msra.mxu0 0.0
        %1327 = vmatprep.subr.mxu0 0.0
        %1328 = vmatpush1.msra.mxu0 0.0
        %1329 = vmatprep.subr.mxu0 0.0
        %1330 = vmatpush1.msra.mxu0 0.0
        %1331 = vmatprep.subr.mxu0 0.0
        %1332 = vmatpush1.msra.mxu0 0.0
        %1333 = vmatprep.subr.mxu0 0.0
        %1334 = vmatpush1.msra.mxu0 0.0
        %1335 = vmatprep.subr.mxu0 0.0
        %1336 = vmatpush1.msra.mxu0 0.0
        %1337 = vmatprep.subr.mxu0 0.0
        %1338 = vmatpush1.msra.mxu0 0.0
        %1339 = vmatprep.subr.mxu0 0.0
        %1340 = vmatpush1.msra.mxu0 0.0
        %1341 = vmatprep.subr.mxu0 0.0
        %1342 = vmatpush1.msra.mxu0 0.0
        %1343 = vmatprep.subr.mxu0 0.0
        %1344 = vmatpush1.msra.mxu0 0.0
        %1345 = vmatprep.subr.mxu0 0.0
        %1346 = vmatpush1.msra.mxu0 0.0
        %1347 = vmatprep.subr.mxu0 0.0
        %1348 = vmatpush1.msra.mxu0 0.0
        %1349 = vmatprep.subr.mxu0 0.0
        %1350 = vmatpush1.msra.mxu0 0.0
        %1351 = vmatprep.subr.mxu0 0.0
        %1352 = vmatpush1.msra.mxu0 0.0
        %1353 = vmatprep.subr.mxu0 0.0
        %1354 = vmatpush1.msra.mxu0 0.0
        %1355 = vmatprep.subr.mxu0 0.0
        %1356 = vmatpush1.msra.mxu0 0.0
        %1357 = vmatprep.mubr.f32.mxu0 0.0
        %1358 = vmatmul.mubr.f32.gmra.mrb[0].mxu0 %v1288
        %v1359 = vpop.f32.mrb[0].mxu0
        %v1360 = vadd.f32 0.0, %v1359
        %v1361 = vpop.f32.mrb[0].mxu0
        %1362 = vmatprep.mubr.f32.mxu0 0.0
        %1363 = vmatmul.mubr.f32.gmra.mrb[0].mxu0 %v1291
        %v1364 = vpop.f32.mrb[0].mxu0
        %v1365 = vadd.f32 0.0, %v1364
        %v1366 = vpop.f32.mrb[0].mxu0
        %1367 = vdwg.mxu0
        %s1368 = scalar_lea.vmem %s557, 1
        %v1369 = vld [vmem:[%s1368] sm:$0x1]
        %v1371 = vlaneseq
        %v1372 = vshrl.u32 %v1371, 7
        %v1373 = vsub.s32 0, %v1372
        %v1374 = vrot.slane %v1369, %v1373
        %v1376 = vadd.f32 %v1360, %v1374
        %v1377 = vand.u32 2147483647, %v1365
        %v1378 = vlog2.pop %v1377
        %v1379 = vmul.f32 %v1378, 0.6931472
        %s1380 = scalar_lea.vmem %s528, 16
        %v1381 = vld [vmem:[%s1380] sm:$0xff]
        %s1382 = scalar_lea.vmem %s533, 2
        %v1383 = vld [vmem:[%s1382] sm:$0x1]
        %s1384 = scalar_lea.vmem %s538, 2
        %v1385 = vld [vmem:[%s1384] sm:$0x1]
        %1386 = vset.pattern.permute.xlu0 2
        %1387 = vperm.xlu0 %1386, %v574
        %v1388 = vpop.permute.xlu0 %1387
        %v1391 = vlaneseq
        %v1392 = vshrl.u32 %v1391, 7
        %v1393 = vsub.s32 0, %v1392
        %v1394 = vrot.slane %v1383, %v1393
        %v1396 = vmul.f32 %v1388, %v1394
        %1397 = vmatprep.subr.mxu0 0.0
        %1398 = vmatpush1.msra.mxu0 %v1381
        %1399 = vmatprep.subr.mxu0 0.0
        %1400 = vmatpush1.msra.mxu0 0.0
        %1401 = vmatprep.subr.mxu0 0.0
        %1402 = vmatpush1.msra.mxu0 0.0
        %1403 = vmatprep.subr.mxu0 0.0
        %1404 = vmatpush1.msra.mxu0 0.0
        %1405 = vmatprep.subr.mxu0 0.0
        %1406 = vmatpush1.msra.mxu0 0.0
        %1407 = vmatprep.subr.mxu0 0.0
        %1408 = vmatpush1.msra.mxu0 0.0
        %1409 = vmatprep.subr.mxu0 0.0
        %1410 = vmatpush1.msra.mxu0 0.0
        %1411 = vmatprep.subr.mxu0 0.0
        %1412 = vmatpush1.msra.mxu0 0.0
        %1413 = vmatprep.subr.mxu0 0.0
        %1414 = vmatpush1.msra.mxu0 0.0
        %1415 = vmatprep.subr.mxu0 0.0
        %1416 = vmatpush1.msra.mxu0 0.0
        %1417 = vmatprep.subr.mxu0 0.0
        %1418 = vmatpush1.msra.mxu0 0.0
        %1419 = vmatprep.subr.mxu0 0.0
        %1420 = vmatpush1.msra.mxu0 0.0
        %1421 = vmatprep.subr.mxu0 0.0
        %1422 = vmatpush1.msra.mxu0 0.0
        %1423 = vmatprep.subr.mxu0 0.0
        %1424 = vmatpush1.msra.mxu0 0.0
        %1425 = vmatprep.subr.mxu0 0.0
        %1426 = vmatpush1.msra.mxu0 0.0
        %1427 = vmatprep.subr.mxu0 0.0
        %1428 = vmatpush1.msra.mxu0 0.0
        %1429 = vmatprep.subr.mxu0 0.0
        %1430 = vmatpush1.msra.mxu0 0.0
        %1431 = vmatprep.subr.mxu0 0.0
        %1432 = vmatpush1.msra.mxu0 0.0
        %1433 = vmatprep.subr.mxu0 0.0
        %1434 = vmatpush1.msra.mxu0 0.0
        %1435 = vmatprep.subr.mxu0 0.0
        %1436 = vmatpush1.msra.mxu0 0.0
        %1437 = vmatprep.subr.mxu0 0.0
        %1438 = vmatpush1.msra.mxu0 0.0
        %1439 = vmatprep.subr.mxu0 0.0
        %1440 = vmatpush1.msra.mxu0 0.0
        %1441 = vmatprep.subr.mxu0 0.0
        %1442 = vmatpush1.msra.mxu0 0.0
        %1443 = vmatprep.subr.mxu0 0.0
        %1444 = vmatpush1.msra.mxu0 0.0
        %1445 = vmatprep.subr.mxu0 0.0
        %1446 = vmatpush1.msra.mxu0 0.0
        %1447 = vmatprep.subr.mxu0 0.0
        %1448 = vmatpush1.msra.mxu0 0.0
        %1449 = vmatprep.subr.mxu0 0.0
        %1450 = vmatpush1.msra.mxu0 0.0
        %1451 = vmatprep.subr.mxu0 0.0
        %1452 = vmatpush1.msra.mxu0 0.0
        %1453 = vmatprep.subr.mxu0 0.0
        %1454 = vmatpush1.msra.mxu0 0.0
        %1455 = vmatprep.subr.mxu0 0.0
        %1456 = vmatpush1.msra.mxu0 0.0
        %1457 = vmatprep.subr.mxu0 0.0
        %1458 = vmatpush1.msra.mxu0 0.0
        %1459 = vmatprep.subr.mxu0 0.0
        %1460 = vmatpush1.msra.mxu0 0.0
        %1461 = vmatprep.mubr.f32.mxu0 0.0
        %1462 = vmatmul.mubr.f32.gmra.mrb[0].mxu0 %v592
        %v1463 = vpop.f32.mrb[0].mxu0
        %v1464 = vadd.f32 %v1396, %v1463
        %v1465 = vpop.f32.mrb[0].mxu0
        %1466 = vdwg.mxu0
        %v1468 = vlaneseq
        %v1469 = vshrl.u32 %v1468, 7
        %v1470 = vsub.s32 0, %v1469
        %v1471 = vrot.slane %v1385, %v1470
        %v1473 = vadd.f32 %v1464, %v1471
        %vm1474 = vcmp.gt.f32.partialorder %v1473, 0.0
        %v1475 = vmul.f32 %v1473, 0.2
        %v1476 = vsel %vm1474, %v1473, %v1475
        %v1477 = vmul.f32 %v1383, 0.2
        %v1479 = vlaneseq
        %v1480 = vshrl.u32 %v1479, 7
        %v1481 = vsub.s32 0, %v1480
        %v1482 = vrot.slane %v1477, %v1481
        %v1484 = vsel %vm1474, %v1394, %v1482
        %s1485 = scalar_lea.vmem [#allocation2], 128
        %v1486 = vld [vmem:[%s1485] sm:$0xff]
        %v1487 = vld [vmem:[%s1485 + $0x8] sm:$0xff]
        %v1488 = vld [vmem:[%s1485 + $0x10] sm:$0xff]
        %v1489 = vld [vmem:[%s1485 + $0x18] sm:$0xff]
        %s1490 = scalar_lea.vmem %s545, 4
        %v1491 = vld [vmem:[%s1490] sm:$0x1]
        %v1493 = vsel %vm687, %v1476, 0
        %v1496 = vsel %vm687, %v1484, 0
        %1498 = vmatprep.subr.mxu0 0.0
        %1499 = vmatpush1.msra.mxu0 %v1486
        %1500 = vmatprep.subr.mxu0 0.0
        %1501 = vmatpush1.msra.mxu0 %v1487
        %1502 = vmatprep.subr.mxu0 0.0
        %1503 = vmatpush1.msra.mxu0 %v1488
        %1504 = vmatprep.subr.mxu0 0.0
        %1505 = vmatpush1.msra.mxu0 %v1489
        %1506 = vmatprep.subr.mxu0 0.0
        %1507 = vmatpush1.msra.mxu0 0.0
        %1508 = vmatprep.subr.mxu0 0.0
        %1509 = vmatpush1.msra.mxu0 0.0
        %1510 = vmatprep.subr.mxu0 0.0
        %1511 = vmatpush1.msra.mxu0 0.0
        %1512 = vmatprep.subr.mxu0 0.0
        %1513 = vmatpush1.msra.mxu0 0.0
        %1514 = vmatprep.subr.mxu0 0.0
        %1515 = vmatpush1.msra.mxu0 0.0
        %1516 = vmatprep.subr.mxu0 0.0
        %1517 = vmatpush1.msra.mxu0 0.0
        %1518 = vmatprep.subr.mxu0 0.0
        %1519 = vmatpush1.msra.mxu0 0.0
        %1520 = vmatprep.subr.mxu0 0.0
        %1521 = vmatpush1.msra.mxu0 0.0
        %1522 = vmatprep.subr.mxu0 0.0
        %1523 = vmatpush1.msra.mxu0 0.0
        %1524 = vmatprep.subr.mxu0 0.0
        %1525 = vmatpush1.msra.mxu0 0.0
        %1526 = vmatprep.subr.mxu0 0.0
        %1527 = vmatpush1.msra.mxu0 0.0
        %1528 = vmatprep.subr.mxu0 0.0
        %1529 = vmatpush1.msra.mxu0 0.0
        %1530 = vmatprep.subr.mxu0 0.0
        %1531 = vmatpush1.msra.mxu0 0.0
        %1532 = vmatprep.subr.mxu0 0.0
        %1533 = vmatpush1.msra.mxu0 0.0
        %1534 = vmatprep.subr.mxu0 0.0
        %1535 = vmatpush1.msra.mxu0 0.0
        %1536 = vmatprep.subr.mxu0 0.0
        %1537 = vmatpush1.msra.mxu0 0.0
        %1538 = vmatprep.subr.mxu0 0.0
        %1539 = vmatpush1.msra.mxu0 0.0
        %1540 = vmatprep.subr.mxu0 0.0
        %1541 = vmatpush1.msra.mxu0 0.0
        %1542 = vmatprep.subr.mxu0 0.0
        %1543 = vmatpush1.msra.mxu0 0.0
        %1544 = vmatprep.subr.mxu0 0.0
        %1545 = vmatpush1.msra.mxu0 0.0
        %1546 = vmatprep.subr.mxu0 0.0
        %1547 = vmatpush1.msra.mxu0 0.0
        %1548 = vmatprep.subr.mxu0 0.0
        %1549 = vmatpush1.msra.mxu0 0.0
        %1550 = vmatprep.subr.mxu0 0.0
        %1551 = vmatpush1.msra.mxu0 0.0
        %1552 = vmatprep.subr.mxu0 0.0
        %1553 = vmatpush1.msra.mxu0 0.0
        %1554 = vmatprep.subr.mxu0 0.0
        %1555 = vmatpush1.msra.mxu0 0.0
        %1556 = vmatprep.subr.mxu0 0.0
        %1557 = vmatpush1.msra.mxu0 0.0
        %1558 = vmatprep.subr.mxu0 0.0
        %1559 = vmatpush1.msra.mxu0 0.0
        %1560 = vmatprep.subr.mxu0 0.0
        %1561 = vmatpush1.msra.mxu0 0.0
        %1562 = vmatprep.mubr.f32.mxu0 0.0
        %1563 = vmatmul.mubr.f32.gmra.mrb[0].mxu0 %v1493
        %v1564 = vpop.f32.mrb[0].mxu0
        %v1565 = vadd.f32 0.0, %v1564
        %v1566 = vpop.f32.mrb[0].mxu0
        %1567 = vmatprep.mubr.f32.mxu0 0.0
        %1568 = vmatmul.mubr.f32.gmra.mrb[0].mxu0 %v1496
        %v1569 = vpop.f32.mrb[0].mxu0
        %v1570 = vadd.f32 0.0, %v1569
        %v1571 = vpop.f32.mrb[0].mxu0
        %1572 = vdwg.mxu0
        %v1574 = vlaneseq
        %v1575 = vshrl.u32 %v1574, 7
        %v1576 = vsub.s32 0, %v1575
        %v1577 = vrot.slane %v1491, %v1576
        %v1579 = vadd.f32 %v1565, %v1577
        %vm1580 = vcmp.gt.f32.partialorder %v1579, 0.0
        %v1581 = vmul.f32 %v1579, 0.2
        %v1582 = vsel %vm1580, %v1579, %v1581
        %v1583 = vmul.f32 %v1570, 0.2
        %v1584 = vsel %vm1580, %v1570, %v1583
        %s1585 = scalar_lea.vmem [#allocation2], 160
        %v1586 = vld [vmem:[%s1585] sm:$0xff]
        %v1587 = vld [vmem:[%s1585 + $0x8] sm:$0xff]
        %v1588 = vld [vmem:[%s1585 + $0x10] sm:$0xff]
        %v1589 = vld [vmem:[%s1585 + $0x18] sm:$0xff]
        %s1590 = scalar_lea.vmem %s545, 5
        %v1591 = vld [vmem:[%s1590] sm:$0x1]
        %v1593 = vsel %vm687, %v1582, 0
        %v1596 = vsel %vm687, %v1584, 0
        %1598 = vmatprep.subr.mxu0 0.0
        %1599 = vmatpush1.msra.mxu0 %v1586
        %1600 = vmatprep.subr.mxu0 0.0
        %1601 = vmatpush1.msra.mxu0 %v1587
        %1602 = vmatprep.subr.mxu0 0.0
        %1603 = vmatpush1.msra.mxu0 %v1588
        %1604 = vmatprep.subr.mxu0 0.0
        %1605 = vmatpush1.msra.mxu0 %v1589
        %1606 = vmatprep.subr.mxu0 0.0
        %1607 = vmatpush1.msra.mxu0 0.0
        %1608 = vmatprep.subr.mxu0 0.0
        %1609 = vmatpush1.msra.mxu0 0.0
        %1610 = vmatprep.subr.mxu0 0.0
        %1611 = vmatpush1.msra.mxu0 0.0
        %1612 = vmatprep.subr.mxu0 0.0
        %1613 = vmatpush1.msra.mxu0 0.0
        %1614 = vmatprep.subr.mxu0 0.0
        %1615 = vmatpush1.msra.mxu0 0.0
        %1616 = vmatprep.subr.mxu0 0.0
        %1617 = vmatpush1.msra.mxu0 0.0
        %1618 = vmatprep.subr.mxu0 0.0
        %1619 = vmatpush1.msra.mxu0 0.0
        %1620 = vmatprep.subr.mxu0 0.0
        %1621 = vmatpush1.msra.mxu0 0.0
        %1622 = vmatprep.subr.mxu0 0.0
        %1623 = vmatpush1.msra.mxu0 0.0
        %1624 = vmatprep.subr.mxu0 0.0
        %1625 = vmatpush1.msra.mxu0 0.0
        %1626 = vmatprep.subr.mxu0 0.0
        %1627 = vmatpush1.msra.mxu0 0.0
        %1628 = vmatprep.subr.mxu0 0.0
        %1629 = vmatpush1.msra.mxu0 0.0
        %1630 = vmatprep.subr.mxu0 0.0
        %1631 = vmatpush1.msra.mxu0 0.0
        %1632 = vmatprep.subr.mxu0 0.0
        %1633 = vmatpush1.msra.mxu0 0.0
        %1634 = vmatprep.subr.mxu0 0.0
        %1635 = vmatpush1.msra.mxu0 0.0
        %1636 = vmatprep.subr.mxu0 0.0
        %1637 = vmatpush1.msra.mxu0 0.0
        %1638 = vmatprep.subr.mxu0 0.0
        %1639 = vmatpush1.msra.mxu0 0.0
        %1640 = vmatprep.subr.mxu0 0.0
        %1641 = vmatpush1.msra.mxu0 0.0
        %1642 = vmatprep.subr.mxu0 0.0
        %1643 = vmatpush1.msra.mxu0 0.0
        %1644 = vmatprep.subr.mxu0 0.0
        %1645 = vmatpush1.msra.mxu0 0.0
        %1646 = vmatprep.subr.mxu0 0.0
        %1647 = vmatpush1.msra.mxu0 0.0
        %1648 = vmatprep.subr.mxu0 0.0
        %1649 = vmatpush1.msra.mxu0 0.0
        %1650 = vmatprep.subr.mxu0 0.0
        %1651 = vmatpush1.msra.mxu0 0.0
        %1652 = vmatprep.subr.mxu0 0.0
        %1653 = vmatpush1.msra.mxu0 0.0
        %1654 = vmatprep.subr.mxu0 0.0
        %1655 = vmatpush1.msra.mxu0 0.0
        %1656 = vmatprep.subr.mxu0 0.0
        %1657 = vmatpush1.msra.mxu0 0.0
        %1658 = vmatprep.subr.mxu0 0.0
        %1659 = vmatpush1.msra.mxu0 0.0
        %1660 = vmatprep.subr.mxu0 0.0
        %1661 = vmatpush1.msra.mxu0 0.0
        %1662 = vmatprep.mubr.f32.mxu0 0.0
        %1663 = vmatmul.mubr.f32.gmra.mrb[0].mxu0 %v1593
        %v1664 = vpop.f32.mrb[0].mxu0
        %v1665 = vadd.f32 0.0, %v1664
        %v1666 = vpop.f32.mrb[0].mxu0
        %1667 = vmatprep.mubr.f32.mxu0 0.0
        %1668 = vmatmul.mubr.f32.gmra.mrb[0].mxu0 %v1596
        %v1669 = vpop.f32.mrb[0].mxu0
        %v1670 = vadd.f32 0.0, %v1669
        %v1671 = vpop.f32.mrb[0].mxu0
        %1672 = vdwg.mxu0
        %v1674 = vlaneseq
        %v1675 = vshrl.u32 %v1674, 7
        %v1676 = vsub.s32 0, %v1675
        %v1677 = vrot.slane %v1591, %v1676
        %v1679 = vadd.f32 %v1665, %v1677
        %vm1680 = vcmp.gt.f32.partialorder %v1679, 0.0
        %v1681 = vmul.f32 %v1679, 0.2
        %v1682 = vsel %vm1680, %v1679, %v1681
        %v1683 = vmul.f32 %v1670, 0.2
        %v1684 = vsel %vm1680, %v1670, %v1683
        %s1685 = scalar_lea.vmem %s552, 64
        %v1686 = vld [vmem:[%s1685] sm:$0xff]
        %v1687 = vld [vmem:[%s1685 + $0x8] sm:$0xff]
        %v1688 = vld [vmem:[%s1685 + $0x10] sm:$0xff]
        %v1689 = vld [vmem:[%s1685 + $0x18] sm:$0xff]
        %v1691 = vsel %vm687, %v1682, 0
        %v1694 = vsel %vm687, %v1684, 0
        %1696 = vmatprep.subr.mxu0 0.0
        %1697 = vmatpush1.msra.mxu0 %v1686
        %1698 = vmatprep.subr.mxu0 0.0
        %1699 = vmatpush1.msra.mxu0 %v1687
        %1700 = vmatprep.subr.mxu0 0.0
        %1701 = vmatpush1.msra.mxu0 %v1688
        %1702 = vmatprep.subr.mxu0 0.0
        %1703 = vmatpush1.msra.mxu0 %v1689
        %1704 = vmatprep.subr.mxu0 0.0
        %1705 = vmatpush1.msra.mxu0 0.0
        %1706 = vmatprep.subr.mxu0 0.0
        %1707 = vmatpush1.msra.mxu0 0.0
        %1708 = vmatprep.subr.mxu0 0.0
        %1709 = vmatpush1.msra.mxu0 0.0
        %1710 = vmatprep.subr.mxu0 0.0
        %1711 = vmatpush1.msra.mxu0 0.0
        %1712 = vmatprep.subr.mxu0 0.0
        %1713 = vmatpush1.msra.mxu0 0.0
        %1714 = vmatprep.subr.mxu0 0.0
        %1715 = vmatpush1.msra.mxu0 0.0
        %1716 = vmatprep.subr.mxu0 0.0
        %1717 = vmatpush1.msra.mxu0 0.0
        %1718 = vmatprep.subr.mxu0 0.0
        %1719 = vmatpush1.msra.mxu0 0.0
        %1720 = vmatprep.subr.mxu0 0.0
        %1721 = vmatpush1.msra.mxu0 0.0
        %1722 = vmatprep.subr.mxu0 0.0
        %1723 = vmatpush1.msra.mxu0 0.0
        %1724 = vmatprep.subr.mxu0 0.0
        %1725 = vmatpush1.msra.mxu0 0.0
        %1726 = vmatprep.subr.mxu0 0.0
        %1727 = vmatpush1.msra.mxu0 0.0
        %1728 = vmatprep.subr.mxu0 0.0
        %1729 = vmatpush1.msra.mxu0 0.0
        %1730 = vmatprep.subr.mxu0 0.0
        %1731 = vmatpush1.msra.mxu0 0.0
        %1732 = vmatprep.subr.mxu0 0.0
        %1733 = vmatpush1.msra.mxu0 0.0
        %1734 = vmatprep.subr.mxu0 0.0
        %1735 = vmatpush1.msra.mxu0 0.0
        %1736 = vmatprep.subr.mxu0 0.0
        %1737 = vmatpush1.msra.mxu0 0.0
        %1738 = vmatprep.subr.mxu0 0.0
        %1739 = vmatpush1.msra.mxu0 0.0
        %1740 = vmatprep.subr.mxu0 0.0
        %1741 = vmatpush1.msra.mxu0 0.0
        %1742 = vmatprep.subr.mxu0 0.0
        %1743 = vmatpush1.msra.mxu0 0.0
        %1744 = vmatprep.subr.mxu0 0.0
        %1745 = vmatpush1.msra.mxu0 0.0
        %1746 = vmatprep.subr.mxu0 0.0
        %1747 = vmatpush1.msra.mxu0 0.0
        %1748 = vmatprep.subr.mxu0 0.0
        %1749 = vmatpush1.msra.mxu0 0.0
        %1750 = vmatprep.subr.mxu0 0.0
        %1751 = vmatpush1.msra.mxu0 0.0
        %1752 = vmatprep.subr.mxu0 0.0
        %1753 = vmatpush1.msra.mxu0 0.0
        %1754 = vmatprep.subr.mxu0 0.0
        %1755 = vmatpush1.msra.mxu0 0.0
        %1756 = vmatprep.subr.mxu0 0.0
        %1757 = vmatpush1.msra.mxu0 0.0
        %1758 = vmatprep.subr.mxu0 0.0
        %1759 = vmatpush1.msra.mxu0 0.0
        %1760 = vmatprep.mubr.f32.mxu0 0.0
        %1761 = vmatmul.mubr.f32.gmra.mrb[0].mxu0 %v1691
        %v1762 = vpop.f32.mrb[0].mxu0
        %v1763 = vadd.f32 0.0, %v1762
        %v1764 = vpop.f32.mrb[0].mxu0
        %1765 = vmatprep.mubr.f32.mxu0 0.0
        %1766 = vmatmul.mubr.f32.gmra.mrb[0].mxu0 %v1694
        %v1767 = vpop.f32.mrb[0].mxu0
        %v1768 = vadd.f32 0.0, %v1767
        %v1769 = vpop.f32.mrb[0].mxu0
        %1770 = vdwg.mxu0
        %s1771 = scalar_lea.vmem %s557, 2
        %v1772 = vld [vmem:[%s1771] sm:$0x1]
        %v1774 = vlaneseq
        %v1775 = vshrl.u32 %v1774, 7
        %v1776 = vsub.s32 0, %v1775
        %v1777 = vrot.slane %v1772, %v1776
        %v1779 = vadd.f32 %v1763, %v1777
        %v1780 = vand.u32 2147483647, %v1768
        %v1781 = vlog2.pop %v1780
        %v1782 = vmul.f32 %v1781, 0.6931472
        %s1783 = scalar_lea.vmem %s528, 24
        %v1784 = vld [vmem:[%s1783] sm:$0xff]
        %s1785 = scalar_lea.vmem %s533, 3
        %v1786 = vld [vmem:[%s1785] sm:$0x1]
        %s1787 = scalar_lea.vmem %s538, 3
        %v1788 = vld [vmem:[%s1787] sm:$0x1]
        %1789 = vset.pattern.permute.xlu0 3
        %1790 = vperm.xlu0 %1789, %v574
        %v1791 = vpop.permute.xlu0 %1790
        %v1794 = vlaneseq
        %v1795 = vshrl.u32 %v1794, 7
        %v1796 = vsub.s32 0, %v1795
        %v1797 = vrot.slane %v1786, %v1796
        %v1799 = vmul.f32 %v1791, %v1797
        %1800 = vmatprep.subr.mxu0 0.0
        %1801 = vmatpush1.msra.mxu0 %v1784
        %1802 = vmatprep.subr.mxu0 0.0
        %1803 = vmatpush1.msra.mxu0 0.0
        %1804 = vmatprep.subr.mxu0 0.0
        %1805 = vmatpush1.msra.mxu0 0.0
        %1806 = vmatprep.subr.mxu0 0.0
        %1807 = vmatpush1.msra.mxu0 0.0
        %1808 = vmatprep.subr.mxu0 0.0
        %1809 = vmatpush1.msra.mxu0 0.0
        %1810 = vmatprep.subr.mxu0 0.0
        %1811 = vmatpush1.msra.mxu0 0.0
        %1812 = vmatprep.subr.mxu0 0.0
        %1813 = vmatpush1.msra.mxu0 0.0
        %1814 = vmatprep.subr.mxu0 0.0
        %1815 = vmatpush1.msra.mxu0 0.0
        %1816 = vmatprep.subr.mxu0 0.0
        %1817 = vmatpush1.msra.mxu0 0.0
        %1818 = vmatprep.subr.mxu0 0.0
        %1819 = vmatpush1.msra.mxu0 0.0
        %1820 = vmatprep.subr.mxu0 0.0
        %1821 = vmatpush1.msra.mxu0 0.0
        %1822 = vmatprep.subr.mxu0 0.0
        %1823 = vmatpush1.msra.mxu0 0.0
        %1824 = vmatprep.subr.mxu0 0.0
        %1825 = vmatpush1.msra.mxu0 0.0
        %1826 = vmatprep.subr.mxu0 0.0
        %1827 = vmatpush1.msra.mxu0 0.0
        %1828 = vmatprep.subr.mxu0 0.0
        %1829 = vmatpush1.msra.mxu0 0.0
        %1830 = vmatprep.subr.mxu0 0.0
        %1831 = vmatpush1.msra.mxu0 0.0
        %1832 = vmatprep.subr.mxu0 0.0
        %1833 = vmatpush1.msra.mxu0 0.0
        %1834 = vmatprep.subr.mxu0 0.0
        %1835 = vmatpush1.msra.mxu0 0.0
        %1836 = vmatprep.subr.mxu0 0.0
        %1837 = vmatpush1.msra.mxu0 0.0
        %1838 = vmatprep.subr.mxu0 0.0
        %1839 = vmatpush1.msra.mxu0 0.0
        %1840 = vmatprep.subr.mxu0 0.0
        %1841 = vmatpush1.msra.mxu0 0.0
        %1842 = vmatprep.subr.mxu0 0.0
        %1843 = vmatpush1.msra.mxu0 0.0
        %1844 = vmatprep.subr.mxu0 0.0
        %1845 = vmatpush1.msra.mxu0 0.0
        %1846 = vmatprep.subr.mxu0 0.0
        %1847 = vmatpush1.msra.mxu0 0.0
        %1848 = vmatprep.subr.mxu0 0.0
        %1849 = vmatpush1.msra.mxu0 0.0
        %1850 = vmatprep.subr.mxu0 0.0
        %1851 = vmatpush1.msra.mxu0 0.0
        %1852 = vmatprep.subr.mxu0 0.0
        %1853 = vmatpush1.msra.mxu0 0.0
        %1854 = vmatprep.subr.mxu0 0.0
        %1855 = vmatpush1.msra.mxu0 0.0
        %1856 = vmatprep.subr.mxu0 0.0
        %1857 = vmatpush1.msra.mxu0 0.0
        %1858 = vmatprep.subr.mxu0 0.0
        %1859 = vmatpush1.msra.mxu0 0.0
        %1860 = vmatprep.subr.mxu0 0.0
        %1861 = vmatpush1.msra.mxu0 0.0
        %1862 = vmatprep.subr.mxu0 0.0
        %1863 = vmatpush1.msra.mxu0 0.0
        %1864 = vmatprep.mubr.f32.mxu0 0.0
        %1865 = vmatmul.mubr.f32.gmra.mrb[0].mxu0 %v592
        %v1866 = vpop.f32.mrb[0].mxu0
        %v1867 = vadd.f32 %v1799, %v1866
        %v1868 = vpop.f32.mrb[0].mxu0
        %1869 = vdwg.mxu0
        %v1871 = vlaneseq
        %v1872 = vshrl.u32 %v1871, 7
        %v1873 = vsub.s32 0, %v1872
        %v1874 = vrot.slane %v1788, %v1873
        %v1876 = vadd.f32 %v1867, %v1874
        %vm1877 = vcmp.gt.f32.partialorder %v1876, 0.0
        %v1878 = vmul.f32 %v1876, 0.2
        %v1879 = vsel %vm1877, %v1876, %v1878
        %v1880 = vmul.f32 %v1786, 0.2
        %v1882 = vlaneseq
        %v1883 = vshrl.u32 %v1882, 7
        %v1884 = vsub.s32 0, %v1883
        %v1885 = vrot.slane %v1880, %v1884
        %v1887 = vsel %vm1877, %v1797, %v1885
        %s1888 = scalar_lea.vmem [#allocation2], 192
        %v1889 = vld [vmem:[%s1888] sm:$0xff]
        %v1890 = vld [vmem:[%s1888 + $0x8] sm:$0xff]
        %v1891 = vld [vmem:[%s1888 + $0x10] sm:$0xff]
        %v1892 = vld [vmem:[%s1888 + $0x18] sm:$0xff]
        %s1893 = scalar_lea.vmem %s545, 6
        %v1894 = vld [vmem:[%s1893] sm:$0x1]
        %v1896 = vsel %vm687, %v1879, 0
        %v1899 = vsel %vm687, %v1887, 0
        %1901 = vmatprep.subr.mxu0 0.0
        %1902 = vmatpush1.msra.mxu0 %v1889
        %1903 = vmatprep.subr.mxu0 0.0
        %1904 = vmatpush1.msra.mxu0 %v1890
        %1905 = vmatprep.subr.mxu0 0.0
        %1906 = vmatpush1.msra.mxu0 %v1891
        %1907 = vmatprep.subr.mxu0 0.0
        %1908 = vmatpush1.msra.mxu0 %v1892
        %1909 = vmatprep.subr.mxu0 0.0
        %1910 = vmatpush1.msra.mxu0 0.0
        %1911 = vmatprep.subr.mxu0 0.0
        %1912 = vmatpush1.msra.mxu0 0.0
        %1913 = vmatprep.subr.mxu0 0.0
        %1914 = vmatpush1.msra.mxu0 0.0
        %1915 = vmatprep.subr.mxu0 0.0
        %1916 = vmatpush1.msra.mxu0 0.0
        %1917 = vmatprep.subr.mxu0 0.0
        %1918 = vmatpush1.msra.mxu0 0.0
        %1919 = vmatprep.subr.mxu0 0.0
        %1920 = vmatpush1.msra.mxu0 0.0
        %1921 = vmatprep.subr.mxu0 0.0
        %1922 = vmatpush1.msra.mxu0 0.0
        %1923 = vmatprep.subr.mxu0 0.0
        %1924 = vmatpush1.msra.mxu0 0.0
        %1925 = vmatprep.subr.mxu0 0.0
        %1926 = vmatpush1.msra.mxu0 0.0
        %1927 = vmatprep.subr.mxu0 0.0
        %1928 = vmatpush1.msra.mxu0 0.0
        %1929 = vmatprep.subr.mxu0 0.0
        %1930 = vmatpush1.msra.mxu0 0.0
        %1931 = vmatprep.subr.mxu0 0.0
        %1932 = vmatpush1.msra.mxu0 0.0
        %1933 = vmatprep.subr.mxu0 0.0
        %1934 = vmatpush1.msra.mxu0 0.0
        %1935 = vmatprep.subr.mxu0 0.0
        %1936 = vmatpush1.msra.mxu0 0.0
        %1937 = vmatprep.subr.mxu0 0.0
        %1938 = vmatpush1.msra.mxu0 0.0
        %1939 = vmatprep.subr.mxu0 0.0
        %1940 = vmatpush1.msra.mxu0 0.0
        %1941 = vmatprep.subr.mxu0 0.0
        %1942 = vmatpush1.msra.mxu0 0.0
        %1943 = vmatprep.subr.mxu0 0.0
        %1944 = vmatpush1.msra.mxu0 0.0
        %1945 = vmatprep.subr.mxu0 0.0
        %1946 = vmatpush1.msra.mxu0 0.0
        %1947 = vmatprep.subr.mxu0 0.0
        %1948 = vmatpush1.msra.mxu0 0.0
        %1949 = vmatprep.subr.mxu0 0.0
        %1950 = vmatpush1.msra.mxu0 0.0
        %1951 = vmatprep.subr.mxu0 0.0
        %1952 = vmatpush1.msra.mxu0 0.0
        %1953 = vmatprep.subr.mxu0 0.0
        %1954 = vmatpush1.msra.mxu0 0.0
        %1955 = vmatprep.subr.mxu0 0.0
        %1956 = vmatpush1.msra.mxu0 0.0
        %1957 = vmatprep.subr.mxu0 0.0
        %1958 = vmatpush1.msra.mxu0 0.0
        %1959 = vmatprep.subr.mxu0 0.0
        %1960 = vmatpush1.msra.mxu0 0.0
        %1961 = vmatprep.subr.mxu0 0.0
        %1962 = vmatpush1.msra.mxu0 0.0
        %1963 = vmatprep.subr.mxu0 0.0
        %1964 = vmatpush1.msra.mxu0 0.0
        %1965 = vmatprep.mubr.f32.mxu0 0.0
        %1966 = vmatmul.mubr.f32.gmra.mrb[0].mxu0 %v1896
        %v1967 = vpop.f32.mrb[0].mxu0
        %v1968 = vadd.f32 0.0, %v1967
        %v1969 = vpop.f32.mrb[0].mxu0
        %1970 = vmatprep.mubr.f32.mxu0 0.0
        %1971 = vmatmul.mubr.f32.gmra.mrb[0].mxu0 %v1899
        %v1972 = vpop.f32.mrb[0].mxu0
        %v1973 = vadd.f32 0.0, %v1972
        %v1974 = vpop.f32.mrb[0].mxu0
        %1975 = vdwg.mxu0
        %v1977 = vlaneseq
        %v1978 = vshrl.u32 %v1977, 7
        %v1979 = vsub.s32 0, %v1978
        %v1980 = vrot.slane %v1894, %v1979
        %v1982 = vadd.f32 %v1968, %v1980
        %vm1983 = vcmp.gt.f32.partialorder %v1982, 0.0
        %v1984 = vmul.f32 %v1982, 0.2
        %v1985 = vsel %vm1983, %v1982, %v1984
        %v1986 = vmul.f32 %v1973, 0.2
        %v1987 = vsel %vm1983, %v1973, %v1986
        %s1988 = scalar_lea.vmem [#allocation2], 224
        %v1989 = vld [vmem:[%s1988] sm:$0xff]
        %v1990 = vld [vmem:[%s1988 + $0x8] sm:$0xff]
        %v1991 = vld [vmem:[%s1988 + $0x10] sm:$0xff]
        %v1992 = vld [vmem:[%s1988 + $0x18] sm:$0xff]
        %s1993 = scalar_lea.vmem %s545, 7
        %v1994 = vld [vmem:[%s1993] sm:$0x1]
        %v1996 = vsel %vm687, %v1985, 0
        %v1999 = vsel %vm687, %v1987, 0
        %2001 = vmatprep.subr.mxu0 0.0
        %2002 = vmatpush1.msra.mxu0 %v1989
        %2003 = vmatprep.subr.mxu0 0.0
        %2004 = vmatpush1.msra.mxu0 %v1990
        %2005 = vmatprep.subr.mxu0 0.0
        %2006 = vmatpush1.msra.mxu0 %v1991
        %2007 = vmatprep.subr.mxu0 0.0
        %2008 = vmatpush1.msra.mxu0 %v1992
        %2009 = vmatprep.subr.mxu0 0.0
        %2010 = vmatpush1.msra.mxu0 0.0
        %2011 = vmatprep.subr.mxu0 0.0
        %2012 = vmatpush1.msra.mxu0 0.0
        %2013 = vmatprep.subr.mxu0 0.0
        %2014 = vmatpush1.msra.mxu0 0.0
        %2015 = vmatprep.subr.mxu0 0.0
        %2016 = vmatpush1.msra.mxu0 0.0
        %2017 = vmatprep.subr.mxu0 0.0
        %2018 = vmatpush1.msra.mxu0 0.0
        %2019 = vmatprep.subr.mxu0 0.0
        %2020 = vmatpush1.msra.mxu0 0.0
        %2021 = vmatprep.subr.mxu0 0.0
        %2022 = vmatpush1.msra.mxu0 0.0
        %2023 = vmatprep.subr.mxu0 0.0
        %2024 = vmatpush1.msra.mxu0 0.0
        %2025 = vmatprep.subr.mxu0 0.0
        %2026 = vmatpush1.msra.mxu0 0.0
        %2027 = vmatprep.subr.mxu0 0.0
        %2028 = vmatpush1.msra.mxu0 0.0
        %2029 = vmatprep.subr.mxu0 0.0
        %2030 = vmatpush1.msra.mxu0 0.0
        %2031 = vmatprep.subr.mxu0 0.0
        %2032 = vmatpush1.msra.mxu0 0.0
        %2033 = vmatprep.subr.mxu0 0.0
        %2034 = vmatpush1.msra.mxu0 0.0
        %2035 = vmatprep.subr.mxu0 0.0
        %2036 = vmatpush1.msra.mxu0 0.0
        %2037 = vmatprep.subr.mxu0 0.0
        %2038 = vmatpush1.msra.mxu0 0.0
        %2039 = vmatprep.subr.mxu0 0.0
        %2040 = vmatpush1.msra.mxu0 0.0
        %2041 = vmatprep.subr.mxu0 0.0
        %2042 = vmatpush1.msra.mxu0 0.0
        %2043 = vmatprep.subr.mxu0 0.0
        %2044 = vmatpush1.msra.mxu0 0.0
        %2045 = vmatprep.subr.mxu0 0.0
        %2046 = vmatpush1.msra.mxu0 0.0
        %2047 = vmatprep.subr.mxu0 0.0
        %2048 = vmatpush1.msra.mxu0 0.0
        %2049 = vmatprep.subr.mxu0 0.0
        %2050 = vmatpush1.msra.mxu0 0.0
        %2051 = vmatprep.subr.mxu0 0.0
        %2052 = vmatpush1.msra.mxu0 0.0
        %2053 = vmatprep.subr.mxu0 0.0
        %2054 = vmatpush1.msra.mxu0 0.0
        %2055 = vmatprep.subr.mxu0 0.0
        %2056 = vmatpush1.msra.mxu0 0.0
        %2057 = vmatprep.subr.mxu0 0.0
        %2058 = vmatpush1.msra.mxu0 0.0
        %2059 = vmatprep.subr.mxu0 0.0
        %2060 = vmatpush1.msra.mxu0 0.0
        %2061 = vmatprep.subr.mxu0 0.0
        %2062 = vmatpush1.msra.mxu0 0.0
        %2063 = vmatprep.subr.mxu0 0.0
        %2064 = vmatpush1.msra.mxu0 0.0
        %2065 = vmatprep.mubr.f32.mxu0 0.0
        %2066 = vmatmul.mubr.f32.gmra.mrb[0].mxu0 %v1996
        %v2067 = vpop.f32.mrb[0].mxu0
        %v2068 = vadd.f32 0.0, %v2067
        %v2069 = vpop.f32.mrb[0].mxu0
        %2070 = vmatprep.mubr.f32.mxu0 0.0
        %2071 = vmatmul.mubr.f32.gmra.mrb[0].mxu0 %v1999
        %v2072 = vpop.f32.mrb[0].mxu0
        %v2073 = vadd.f32 0.0, %v2072
        %v2074 = vpop.f32.mrb[0].mxu0
        %2075 = vdwg.mxu0
        %v2077 = vlaneseq
        %v2078 = vshrl.u32 %v2077, 7
        %v2079 = vsub.s32 0, %v2078
        %v2080 = vrot.slane %v1994, %v2079
        %v2082 = vadd.f32 %v2068, %v2080
        %vm2083 = vcmp.gt.f32.partialorder %v2082, 0.0
        %v2084 = vmul.f32 %v2082, 0.2
        %v2085 = vsel %vm2083, %v2082, %v2084
        %v2086 = vmul.f32 %v2073, 0.2
        %v2087 = vsel %vm2083, %v2073, %v2086
        %s2088 = scalar_lea.vmem %s552, 96
        %v2089 = vld [vmem:[%s2088] sm:$0xff]
        %v2090 = vld [vmem:[%s2088 + $0x8] sm:$0xff]
        %v2091 = vld [vmem:[%s2088 + $0x10] sm:$0xff]
        %v2092 = vld [vmem:[%s2088 + $0x18] sm:$0xff]
        %v2094 = vsel %vm687, %v2085, 0
        %v2097 = vsel %vm687, %v2087, 0
        %2099 = vmatprep.subr.mxu0 0.0
        %2100 = vmatpush1.msra.mxu0 %v2089
        %2101 = vmatprep.subr.mxu0 0.0
        %2102 = vmatpush1.msra.mxu0 %v2090
        %2103 = vmatprep.subr.mxu0 0.0
        %2104 = vmatpush1.msra.mxu0 %v2091
        %2105 = vmatprep.subr.mxu0 0.0
        %2106 = vmatpush1.msra.mxu0 %v2092
        %2107 = vmatprep.subr.mxu0 0.0
        %2108 = vmatpush1.msra.mxu0 0.0
        %2109 = vmatprep.subr.mxu0 0.0
        %2110 = vmatpush1.msra.mxu0 0.0
        %2111 = vmatprep.subr.mxu0 0.0
        %2112 = vmatpush1.msra.mxu0 0.0
        %2113 = vmatprep.subr.mxu0 0.0
        %2114 = vmatpush1.msra.mxu0 0.0
        %2115 = vmatprep.subr.mxu0 0.0
        %2116 = vmatpush1.msra.mxu0 0.0
        %2117 = vmatprep.subr.mxu0 0.0
        %2118 = vmatpush1.msra.mxu0 0.0
        %2119 = vmatprep.subr.mxu0 0.0
        %2120 = vmatpush1.msra.mxu0 0.0
        %2121 = vmatprep.subr.mxu0 0.0
        %2122 = vmatpush1.msra.mxu0 0.0
        %2123 = vmatprep.subr.mxu0 0.0
        %2124 = vmatpush1.msra.mxu0 0.0
        %2125 = vmatprep.subr.mxu0 0.0
        %2126 = vmatpush1.msra.mxu0 0.0
        %2127 = vmatprep.subr.mxu0 0.0
        %2128 = vmatpush1.msra.mxu0 0.0
        %2129 = vmatprep.subr.mxu0 0.0
        %2130 = vmatpush1.msra.mxu0 0.0
        %2131 = vmatprep.subr.mxu0 0.0
        %2132 = vmatpush1.msra.mxu0 0.0
        %2133 = vmatprep.subr.mxu0 0.0
        %2134 = vmatpush1.msra.mxu0 0.0
        %2135 = vmatprep.subr.mxu0 0.0
        %2136 = vmatpush1.msra.mxu0 0.0
        %2137 = vmatprep.subr.mxu0 0.0
        %2138 = vmatpush1.msra.mxu0 0.0
        %2139 = vmatprep.subr.mxu0 0.0
        %2140 = vmatpush1.msra.mxu0 0.0
        %2141 = vmatprep.subr.mxu0 0.0
        %2142 = vmatpush1.msra.mxu0 0.0
        %2143 = vmatprep.subr.mxu0 0.0
        %2144 = vmatpush1.msra.mxu0 0.0
        %2145 = vmatprep.subr.mxu0 0.0
        %2146 = vmatpush1.msra.mxu0 0.0
        %2147 = vmatprep.subr.mxu0 0.0
        %2148 = vmatpush1.msra.mxu0 0.0
        %2149 = vmatprep.subr.mxu0 0.0
        %2150 = vmatpush1.msra.mxu0 0.0
        %2151 = vmatprep.subr.mxu0 0.0
        %2152 = vmatpush1.msra.mxu0 0.0
        %2153 = vmatprep.subr.mxu0 0.0
        %2154 = vmatpush1.msra.mxu0 0.0
        %2155 = vmatprep.subr.mxu0 0.0
        %2156 = vmatpush1.msra.mxu0 0.0
        %2157 = vmatprep.subr.mxu0 0.0
        %2158 = vmatpush1.msra.mxu0 0.0
        %2159 = vmatprep.subr.mxu0 0.0
        %2160 = vmatpush1.msra.mxu0 0.0
        %2161 = vmatprep.subr.mxu0 0.0
        %2162 = vmatpush1.msra.mxu0 0.0
        %2163 = vmatprep.mubr.f32.mxu0 0.0
        %2164 = vmatmul.mubr.f32.gmra.mrb[0].mxu0 %v2094
        %v2165 = vpop.f32.mrb[0].mxu0
        %v2166 = vadd.f32 0.0, %v2165
        %v2167 = vpop.f32.mrb[0].mxu0
        %2168 = vmatprep.mubr.f32.mxu0 0.0
        %2169 = vmatmul.mubr.f32.gmra.mrb[0].mxu0 %v2097
        %v2170 = vpop.f32.mrb[0].mxu0
        %v2171 = vadd.f32 0.0, %v2170
        %v2172 = vpop.f32.mrb[0].mxu0
        %2173 = vdwg.mxu0
        %s2174 = scalar_lea.vmem %s557, 3
        %v2175 = vld [vmem:[%s2174] sm:$0x1]
        %v2177 = vlaneseq
        %v2178 = vshrl.u32 %v2177, 7
        %v2179 = vsub.s32 0, %v2178
        %v2180 = vrot.slane %v2175, %v2179
        %v2182 = vadd.f32 %v2166, %v2180
        %v2183 = vand.u32 2147483647, %v2171
        %v2184 = vlog2.pop %v2183
        %v2185 = vmul.f32 %v2184, 0.6931472
        %2187 = vrot.lane.b32.xlu0 %v1376, 1
        %v2188 = vpop.permute.xlu0 %2187
        %2191 = vrot.lane.b32.xlu0 %v1779, 2
        %v2192 = vpop.permute.xlu0 %2191
        %2195 = vrot.lane.b32.xlu0 %v2182, 3
        %v2196 = vpop.permute.xlu0 %2195
        %vm2198 = vcmask 7168
        %v2199 = vsel %vm2198, %v973, %v2188
        %vm2200 = vcmask 15360
        %v2201 = vsel %vm2200, %v2199, %v2192
        %vm2202 = vcmask 23552
        %v2203 = vsel %vm2202, %v2201, %v2196
        %vm2204 = vcmask 31744
        %2205 = vst.msk [vmem:[%s565] sm:$0xff] %vm2204, %v2203
        %2207 = vrot.lane.b32.xlu0 %v1379, 1
        %v2208 = vpop.permute.xlu0 %2207
        %2211 = vrot.lane.b32.xlu0 %v1782, 2
        %v2212 = vpop.permute.xlu0 %2211
        %2215 = vrot.lane.b32.xlu0 %v2185, 3
        %v2216 = vpop.permute.xlu0 %2215
        %v2218 = vsel %vm2198, %v976, %v2208
        %v2219 = vsel %vm2200, %v2218, %v2212
        %v2220 = vsel %vm2202, %v2219, %v2216
        %2221 = vst.msk [vmem:[%s572] sm:$0xff] %vm2204, %v2220
        %p2222 = scmp.lt.s32.totalorder %s28, 2
        %s2223 = scalar_select %p2222, %s28, 2
        %p2224 = scmp.lt.s32.totalorder %s27, 0
        %s2225 = scalar_select %p2224, %s27, 0
        %s2226 = sadd.s32 %s2225, %s2223
        %s2227 = smul.addr %s2226, 8
        %s2228 = scalar_lea.vmem %s9, %s2227
        %p2229 = scmp.lt.s32.totalorder %s28, 2
        %s2230 = scalar_select %p2229, %s28, 2
        %p2231 = scmp.lt.s32.totalorder %s27, 0
        %s2232 = scalar_select %p2231, %s27, 0
        %s2233 = sadd.s32 %s2232, %s2230
        %s2234 = smul.addr %s2233, 8
        %s2235 = scalar_lea.vmem %s10, %s2234
        // Predicated region
        $region61: #{tpu_custom_call.1} parent=55 // pred_check
          %p2236 = pneg %p291
        $region62: #{tpu_custom_call.1} parent=55 // pred_check_branch
          %2238 = sbr.rel (%p2236) target = $region64
        $region63: #{tpu_custom_call.1} parent=55 // pred_region
          _
        $region64: #{tpu_custom_call.1} parent=55 // pred_fallthru
          _
        // Predicated region
        $region65: #{tpu_custom_call.1} parent=55 // pred_check
          %p2239 = pneg %p319
        $region66: #{tpu_custom_call.1} parent=55 // pred_check_branch
          %2241 = sbr.rel (%p2239) target = $region68
        $region67: #{tpu_custom_call.1} parent=55 // pred_region
          _
        $region68: #{tpu_custom_call.1} parent=55 // pred_fallthru
          _
      $region56: #{tpu_custom_call.1} parent=5 // pred_fallthru
        _
      %p2242 = scmp.le.s32.totalorder 2, %s18
      // Predicated region
      $region69: #{tpu_custom_call.1} parent=5 // pred_check
        %p2243 = pneg %p2242
      $region70: #{tpu_custom_call.1} parent=5 // pred_check_branch
        %2245 = sbr.rel (%p2243) target = $region72
      $region71: #{tpu_custom_call.1} parent=5 // pred_region
        %s2246 = ssub.s32 %s18, 2
        // Predicated region
        $region73: #{tpu_custom_call.1} parent=71 // pred_check
          %p2247 = pneg %p297
        $region74: #{tpu_custom_call.1} parent=71 // pred_check_branch
          %2249 = sbr.rel (%p2247) target = $region76
        $region75: #{tpu_custom_call.1} parent=71 // pred_region
          %p2250 = scmp.lt.s32.totalorder %s30, 2
          %s2251 = scalar_select %p2250, %s30, 2
          %p2252 = scmp.lt.s32.totalorder %s29, 0
          %s2253 = scalar_select %p2252, %s29, 0
          %s2254 = sadd.s32 %s2253, %s2251
          %s2255 = smul.addr %s2254, 8
          %s2256 = scalar_lea.vmem %s9, %s2255
        $region76: #{tpu_custom_call.1} parent=71 // pred_fallthru
          _
        // Predicated region
        $region77: #{tpu_custom_call.1} parent=71 // pred_check
          %p2257 = pneg %p325
        $region78: #{tpu_custom_call.1} parent=71 // pred_check_branch
          %2259 = sbr.rel (%p2257) target = $region80
        $region79: #{tpu_custom_call.1} parent=71 // pred_region
          %p2260 = scmp.lt.s32.totalorder %s30, 2
          %s2261 = scalar_select %p2260, %s30, 2
          %p2262 = scmp.lt.s32.totalorder %s29, 0
          %s2263 = scalar_select %p2262, %s29, 0
          %s2264 = sadd.s32 %s2263, %s2261
          %s2265 = smul.addr %s2264, 8
          %s2266 = scalar_lea.vmem %s10, %s2265
        $region80: #{tpu_custom_call.1} parent=71 // pred_fallthru
          _
      $region72: #{tpu_custom_call.1} parent=5 // pred_fallthru
        _
    $region6: #{tpu_custom_call.1} parent=1 // loop_footer
      %s22 = sadd.s32 1, %s18
    $region7: #{tpu_custom_call.1} parent=1 // loop_footer_branch
      %17 = sbr.rel target = $region3
    $region8: #{tpu_custom_call.1} parent=1 // loop_exit
      _
    %2267 = vsyncpa [#allocation3], 1
    %s2268 = scalar_lea.sflag [#allocation3], 1
    %2269 = vsyncpa %s2268, 1

</llo_original>
